<compile_context>
chip_gen: v5e
topology: v5e:2x2
jax: 0.10.0
libtpu: 0.0.40
codegen_flags: <defaults>
</compile_context>

<pallas_src>
import functools

import jax
import jax.numpy as jnp
from jax.experimental import pallas as pl
from jax.experimental.pallas import tpu as pltpu


_RC = 8  # output rows per inner chunk (one sublane tile)


def _round_up(x, m):
    return (x + m - 1) // m * m


def _vmem_capacity_bytes():
    try:
        return int(pltpu.get_tpu_info().vmem_capacity_bytes)
    except Exception:  # query unavailable -> be conservative (v7x per-core VMEM)
        return 64 << 20


def _pick_tile_h(H, W, C, itemsize, B, budget):
    """Tile height: a multiple of 8 dividing H (or full H), the biggest that fits the per-step
    working-set budget, preferring >= 4 grid steps so v7x's two TensorCores stay busy."""
    WC = W * C
    padl = _round_up(max(C, 1), 128)
    width = WC + 2 * padl

    def step_bytes(th):
        slab = (th + 2) * width * itemsize                      # scratch slab
        io = 2 * 2 * th * WC * itemsize + 4 * 2 * WC * itemsize  # dbl-buffered in/out + halo rows
        vals = (3 * (_RC + 2) * width + 3 * _RC * WC) * 4        # live per-chunk value slack
        return slab + io + vals

    cands = [h for h in range(8, H + 1, 8) if H % h == 0]
    if not cands:
        return H  # no multiple-of-8 divisor: one full-height tile (still correct, no TH=1 cliff)
    fitting = [h for h in cands if step_bytes(h) <= budget] or [cands[0]]
    preferred = [h for h in fitting if B * (H // h) >= 4]
    return max(preferred or fitting)


def _dwconv_kernel(x_ref, top_ref, bot_ref, w_ref, b_ref, o_ref, xpad_ref, *, C, PADL):
    """One (batch, row-tile) grid step in the lane-dense (rows, W*C) layout.

    x_ref:    (1, TH, WC)   main row tile (input dtype)
    top_ref:  (1, 1, WC)    row just above the tile (clamped index; zeros written at t == 0)
    bot_ref:  (1, 1, WC)    row just below the tile (clamped index; zeros written at t == last)
    w_ref:    (9, WC) f32   w_ref[kh*3 + kw, w*C + c] == torch_weight[c, 0, kh, kw]
    b_ref:    (1, WC) f32   bias tiled along W
    o_ref:    (1, TH, WC)
    xpad_ref: (TH+2, 2*PADL+WC) scratch slab in the INPUT dtype; per row:
                lanes [PADL-C, PADL)          zero left pad   (input col -1)
                lanes [PADL,   PADL+WC)       the row         (input cols 0..W-1)
                lanes [PADL+WC, PADL+WC+C)    zero right pad  (input col W)
              slab row r <-> input row (tile_start + r - 1); rows 0 / TH+1 are the halo rows.
    """
    _, TH, WC = o_ref.shape
    dt = o_ref.dtype
    f32 = jnp.float32
    t = pl.program_id(1)
    last_t = pl.num_programs(1) - 1

    # ---- assemble the padded slab (kept in the input dtype) ------------------------------------
    # The narrow zero side-columns are (re)written every step: scratch persists across grid steps
    # and a "write once at step 0" guard would never fire on the second TensorCore's scratch
    # when the parallel grid is split across cores.
    zcol = jnp.zeros((TH + 2, C), dt)
    xpad_ref[:, PADL - C:PADL] = zcol
    xpad_ref[:, PADL + WC:PADL + WC + C] = zcol

    zrow = jnp.zeros((1, WC), dt)

    @pl.when(t > 0)
    def _():
        xpad_ref[0:1, PADL:PADL + WC] = top_ref[0]

    @pl.when(t == 0)
    def _():
        xpad_ref[0:1, PADL:PADL + WC] = zrow

    @pl.when(t < last_t)
    def _():
        xpad_ref[TH + 1:TH + 2, PADL:PADL + WC] = bot_ref[0]

    @pl.when(t == last_t)
    def _():
        xpad_ref[TH + 1:TH + 2, PADL:PADL + WC] = zrow

    # Main rows: lane offset PADL is a multiple of 128 -> unmasked lane-dense copy.
    xpad_ref[1:TH + 1, PADL:PADL + WC] = x_ref[0]

    # ---- 9-tap depthwise MAC, chunked so the f32 accumulator stays vreg-resident ---------------
    bias = b_ref[0, :].astype(f32)  # (WC,)

    def compute_chunk(c0, rc):
        # Slab rows [c0, c0+rc+2) <-> input rows [tile_start+c0-1, tile_start+c0+rc]; c0 is a
        # multiple of 8 so this single read is sublane-aligned; all shifted operands below are
        # static slices of the in-register value (no unaligned VMEM re-reads of the slab).
        rows = xpad_ref[pl.ds(c0, rc + 2), :]                        # (rc+2, WIDTH), input dtype
        acc = jnp.broadcast_to(bias[None, :], (rc, WC))              # bias folded into the acc
        for kw in range(3):
            off = PADL + (kw - 1) * C
            win = rows[:, off:off + WC]                              # lane shift by (kw-1)*C
            for kh in range(3):
                tap = w_ref[kh * 3 + kw, :].astype(f32)              # (WC,)
                acc = acc + win[kh:kh + rc, :].astype(f32) * tap     # kh shift: cheap row slice
        o_ref[0, pl.ds(c0, rc), :] = acc.astype(dt)                  # lane-dense unmasked store

    n_full = TH // _RC
    if n_full > 0:
        def body(i, carry):
            compute_chunk(pl.multiple_of(i * _RC, _RC), _RC)
            return carry
        jax.lax.fori_loop(0, n_full, body, 0, unroll=True)
    rem = TH - n_full * _RC
    if rem:
        compute_chunk(n_full * _RC, rem)


@functools.partial(jax.jit, static_argnames=("H", "W"))
def dwconv(x, weight, bias, H, W):
    """x: (B, N, C) with N == H*W.  weight: (C, 1, 3, 3) torch layout.  bias: (C,)."""
    B, N, C = x.shape
    assert N == H * W
    WC = W * C
    itemsize = jnp.dtype(x.dtype).itemsize

    vmem_cap = _vmem_capacity_bytes()
    # ~6-8 MiB/step on v7x (64 MiB VMEM), ~12-16 MiB/step on v5e/v6e (128 MiB).
    budget = min(max(vmem_cap // 10, 6 << 20), 16 << 20)
    TH = _pick_tile_h(H, W, C, itemsize, B, budget)
    n_t = H // TH
    PADL = _round_up(max(C, 1), 128)
    WIDTH = WC + 2 * PADL

    # Lane-dense views: pure reshapes (bitcasts) of the token-major (B, N, C) tensor.
    x_rows = x.reshape(B, H, WC)
    x_flat = x.reshape(B * H, 1, WC)  # 1-row view for the halo fetches

    # Per-tap weight / bias vectors tiled along W so they broadcast over the (row, W*C) layout.
    w9 = jnp.tile(jnp.transpose(weight[:, 0, :, :], (1, 2, 0)).reshape(9, C),
                  (1, W)).astype(jnp.float32)                        # (9, WC)
    b9 = jnp.tile(bias.reshape(1, C), (1, W)).astype(jnp.float32)    # (1, WC)

    # VMEM budget: slab + double-buffered main/halo/out blocks + weights, with headroom, capped
    # below this generation's physical per-core VMEM.
    blk = TH * WC * itemsize
    need = ((TH + 2) * WIDTH * itemsize      # scratch slab
            + 2 * blk + 2 * blk              # double-buffered in / out blocks
            + 4 * 2 * WC * itemsize          # double-buffered halo rows
            + 2 * 10 * WC * 4)               # weights + bias
    vmem_limit = int(min(max(need + (8 << 20), 32 << 20), int(0.75 * vmem_cap)))

    kernel = functools.partial(_dwconv_kernel, C=C, PADL=PADL)

    out = pl.pallas_call(
        kernel,
        out_shape=jax.ShapeDtypeStruct((B, H, WC), x.dtype),
        grid_spec=pltpu.PrefetchScalarGridSpec(
            num_scalar_prefetch=0,
            grid=(B, n_t),
            in_specs=[
                pl.BlockSpec((1, TH, WC), lambda b, t: (b, t, 0)),
                # 1-row halo blocks from the (B*H, 1, WC) view; indices clamped to the image,
                # the kernel writes zeros instead at the global top/bottom tile.
                pl.BlockSpec((1, 1, WC),
                             lambda b, t: (b * H + jnp.maximum(t * TH - 1, 0), 0, 0)),
                pl.BlockSpec((1, 1, WC),
                             lambda b, t: (b * H + jnp.minimum(t * TH + TH, H - 1), 0, 0)),
                pl.BlockSpec((9, WC), lambda b, t: (0, 0)),
                pl.BlockSpec((1, WC), lambda b, t: (0, 0)),
            ],
            out_specs=pl.BlockSpec((1, TH, WC), lambda b, t: (b, t, 0)),
            scratch_shapes=[pltpu.VMEM((TH + 2, WIDTH), x.dtype)],
        ),
        compiler_params=pltpu.CompilerParams(
            dimension_semantics=("parallel", "parallel"),
            vmem_limit_bytes=vmem_limit,
        ),
    )(x_rows, x_flat, x_flat, w9, b9)

    return out.reshape(B, N, C)


def _reference_dwconv(x, weight, bias, H, W):
    """Pure-JAX reference mirroring the PyTorch NCHW semantics."""
    B, N, C = x.shape
    x_nchw = jnp.transpose(x, (0, 2, 1)).reshape(B, C, H, W)
    out = jax.lax.conv_general_dilated(
        x_nchw, weight,
        window_strides=(1, 1), padding=((1, 1), (1, 1)),
        dimension_numbers=("NCHW", "OIHW", "NCHW"),
        feature_group_count=C,
        precision=jax.lax.Precision.HIGHEST,
    ) + bias[None, :, None, None]
    return jnp.transpose(out.reshape(B, C, N), (0, 2, 1))


if __name__ == "__main__":
    B, C, H, W = 2, 32, 32, 16      # W*C = 512 (lane-dense), two row-tiles/image -> halo paths hit
    N = H * W

    key = jax.random.PRNGKey(0)
    kx, kw_, kb = jax.random.split(key, 3)
    x = jax.random.normal(kx, (B, N, C), dtype=jnp.float32)
    weight = jax.random.normal(kw_, (C, 1, 3, 3), dtype=jnp.float32) * 0.1
    bias = jax.random.normal(kb, (C,), dtype=jnp.float32) * 0.1

    out = dwconv(x, weight, bias, H, W)
    jax.block_until_ready(out)

    ref = _reference_dwconv(x, weight, bias, H, W)
    assert out.shape == (B, N, C)
    assert jnp.allclose(out, ref, atol=2e-4, rtol=2e-4), float(jnp.max(jnp.abs(out - ref)))

    print("KERNEL_OK")
</pallas_src>

<mosaic_0001>
module attributes {stable_mosaic.version = 11 : i64} {
  func.func @_dwconv_kernel(%arg0: i32, %arg1: i32, %arg2: memref<1x16x512xf32, #tpu.memory_space<vmem>>, %arg3: memref<1x1x512xf32, #tpu.memory_space<vmem>>, %arg4: memref<1x1x512xf32, #tpu.memory_space<vmem>>, %arg5: memref<9x512xf32, #tpu.memory_space<vmem>>, %arg6: memref<1x512xf32, #tpu.memory_space<vmem>>, %arg7: memref<1x16x512xf32, #tpu.memory_space<vmem>>, %arg8: memref<18x768xf32, #tpu.memory_space<vmem>>) attributes {dimension_semantics = [#tpu.dimension_semantics<parallel>, #tpu.dimension_semantics<parallel>], iteration_bounds = array<i64: 2, 2>, scalar_prefetch = 0 : i64, scratch_operands = 1 : i64, tpu.core_type = #tpu.core_type<tc>, window_params = [{transform_indices = @transform_0, window_bounds = array<i64: 1, 16, 512>}, {transform_indices = @transform_1, window_bounds = array<i64: 1, 1, 512>}, {transform_indices = @transform_2, window_bounds = array<i64: 1, 1, 512>}, {pipeline_mode = #tpu.pipeline_mode<synchronous>, transform_indices = @transform_3, window_bounds = array<i64: 9, 512>}, {pipeline_mode = #tpu.pipeline_mode<synchronous>, transform_indices = @transform_4, window_bounds = array<i64: 1, 512>}, {transform_indices = @transform_5, window_bounds = array<i64: 1, 16, 512>}]} {
    %cst = arith.constant 0.000000e+00 : f32
    %0 = vector.broadcast %cst : f32 to vector<18x32xf32>
    %c0 = arith.constant 0 : index
    %c96 = arith.constant 96 : index
    %1 = vector.load %arg8[%c0, %c96] : memref<18x768xf32, #tpu.memory_space<vmem>>, vector<18x32xf32>
    tpu.vector_store %arg8[%c0, %c96], %0 {strides = array<i32>} : memref<18x768xf32, #tpu.memory_space<vmem>>, vector<18x32xf32>,
    %c0_0 = arith.constant 0 : index
    %c640 = arith.constant 640 : index
    %2 = vector.load %arg8[%c0_0, %c640] : memref<18x768xf32, #tpu.memory_space<vmem>>, vector<18x32xf32>
    tpu.vector_store %arg8[%c0_0, %c640], %0 {strides = array<i32>} : memref<18x768xf32, #tpu.memory_space<vmem>>, vector<18x32xf32>,
    %cst_1 = arith.constant 0.000000e+00 : f32
    %3 = vector.broadcast %cst_1 : f32 to vector<1x512xf32>
    %c0_i32 = arith.constant 0 : i32
    %4 = arith.cmpi sgt, %arg1, %c0_i32 : i32
    %5 = arith.extui %4 : i1 to i32
    %c0_i32_2 = arith.constant 0 : i32
    %6 = arith.cmpi ne, %5, %c0_i32_2 : i32
    scf.if %6 {
      %c0_51 = arith.constant 0 : index
      %c0_52 = arith.constant 0 : index
      %c0_53 = arith.constant 0 : index
      %175 = vector.load %arg3[%c0_51, %c0_52, %c0_53] : memref<1x1x512xf32, #tpu.memory_space<vmem>>, vector<1x1x512xf32>
      %176 = vector.shape_cast %175 : vector<1x1x512xf32> to vector<1x512xf32>
      %c0_54 = arith.constant 0 : index
      %c128_55 = arith.constant 128 : index
      %177 = vector.load %arg8[%c0_54, %c128_55] : memref<18x768xf32, #tpu.memory_space<vmem>>, vector<1x512xf32>
      tpu.vector_store %arg8[%c0_54, %c128_55], %176 {strides = array<i32>} : memref<18x768xf32, #tpu.memory_space<vmem>>, vector<1x512xf32>,
    } else {
    }
    %c0_i32_3 = arith.constant 0 : i32
    %7 = arith.cmpi eq, %arg1, %c0_i32_3 : i32
    %8 = arith.extui %7 : i1 to i32
    %c0_i32_4 = arith.constant 0 : i32
    %9 = arith.cmpi ne, %8, %c0_i32_4 : i32
    scf.if %9 {
      %c0_51 = arith.constant 0 : index
      %c128_52 = arith.constant 128 : index
      %175 = vector.load %arg8[%c0_51, %c128_52] : memref<18x768xf32, #tpu.memory_space<vmem>>, vector<1x512xf32>
      tpu.vector_store %arg8[%c0_51, %c128_52], %3 {strides = array<i32>} : memref<18x768xf32, #tpu.memory_space<vmem>>, vector<1x512xf32>,
    } else {
    }
    %c1_i32 = arith.constant 1 : i32
    %10 = arith.cmpi slt, %arg1, %c1_i32 : i32
    %11 = arith.extui %10 : i1 to i32
    %c0_i32_5 = arith.constant 0 : i32
    %12 = arith.cmpi ne, %11, %c0_i32_5 : i32
    scf.if %12 {
      %c0_51 = arith.constant 0 : index
      %c0_52 = arith.constant 0 : index
      %c0_53 = arith.constant 0 : index
      %175 = vector.load %arg4[%c0_51, %c0_52, %c0_53] : memref<1x1x512xf32, #tpu.memory_space<vmem>>, vector<1x1x512xf32>
      %176 = vector.shape_cast %175 : vector<1x1x512xf32> to vector<1x512xf32>
      %c17 = arith.constant 17 : index
      %c128_54 = arith.constant 128 : index
      %177 = vector.load %arg8[%c17, %c128_54] : memref<18x768xf32, #tpu.memory_space<vmem>>, vector<1x512xf32>
      tpu.vector_store %arg8[%c17, %c128_54], %176 {strides = array<i32>} : memref<18x768xf32, #tpu.memory_space<vmem>>, vector<1x512xf32>,
    } else {
    }
    %c1_i32_6 = arith.constant 1 : i32
    %13 = arith.cmpi eq, %arg1, %c1_i32_6 : i32
    %14 = arith.extui %13 : i1 to i32
    %c0_i32_7 = arith.constant 0 : i32
    %15 = arith.cmpi ne, %14, %c0_i32_7 : i32
    scf.if %15 {
      %c17 = arith.constant 17 : index
      %c128_51 = arith.constant 128 : index
      %175 = vector.load %arg8[%c17, %c128_51] : memref<18x768xf32, #tpu.memory_space<vmem>>, vector<1x512xf32>
      tpu.vector_store %arg8[%c17, %c128_51], %3 {strides = array<i32>} : memref<18x768xf32, #tpu.memory_space<vmem>>, vector<1x512xf32>,
    } else {
    }
    %c0_8 = arith.constant 0 : index
    %c0_9 = arith.constant 0 : index
    %c0_10 = arith.constant 0 : index
    %16 = vector.load %arg2[%c0_8, %c0_9, %c0_10] : memref<1x16x512xf32, #tpu.memory_space<vmem>>, vector<1x16x512xf32>
    %17 = vector.shape_cast %16 : vector<1x16x512xf32> to vector<16x512xf32>
    %c1 = arith.constant 1 : index
    %c128 = arith.constant 128 : index
    %18 = vector.load %arg8[%c1, %c128] : memref<18x768xf32, #tpu.memory_space<vmem>>, vector<16x512xf32>
    tpu.vector_store %arg8[%c1, %c128], %17 {strides = array<i32>} : memref<18x768xf32, #tpu.memory_space<vmem>>, vector<16x512xf32>,
    %c0_11 = arith.constant 0 : index
    %c0_12 = arith.constant 0 : index
    %19 = vector.load %arg6[%c0_11, %c0_12] : memref<1x512xf32, #tpu.memory_space<vmem>>, vector<1x512xf32>
    %20 = vector.shape_cast %19 : vector<1x512xf32> to vector<512xf32>
    %c0_i32_13 = arith.constant 0 : i32
    %c8_i32 = arith.constant 8 : i32
    %21 = arith.muli %c0_i32_13, %c8_i32 : i32
    %22 = tpu.assume_multiple %21, 8 : i32
    %23 = arith.index_cast %22 : i32 to index
    %c0_14 = arith.constant 0 : index
    %24 = vector.load %arg8[%23, %c0_14] : memref<18x768xf32, #tpu.memory_space<vmem>>, vector<10x768xf32>
    %25 = vector.shape_cast %20 : vector<512xf32> to vector<1x512xf32>
    %26 = vector.shape_cast %25 : vector<1x512xf32> to vector<1x512xf32>
    %27 = vector.broadcast %26 : vector<1x512xf32> to vector<8x512xf32>
    %28 = vector.extract_strided_slice %24 {offsets = [0, 96], sizes = [10, 512], strides = [1, 1]} : vector<10x768xf32> to vector<10x512xf32>
    %c0_15 = arith.constant 0 : index
    %c0_16 = arith.constant 0 : index
    %29 = vector.load %arg5[%c0_15, %c0_16] : memref<9x512xf32, #tpu.memory_space<vmem>>, vector<1x512xf32>
    %30 = vector.shape_cast %29 : vector<1x512xf32> to vector<512xf32>
    %31 = vector.extract_strided_slice %28 {offsets = [0, 0], sizes = [8, 512], strides = [1, 1]} : vector<10x512xf32> to vector<8x512xf32>
    %32 = vector.shape_cast %30 : vector<512xf32> to vector<1x512xf32>
    %33 = vector.broadcast %32 : vector<1x512xf32> to vector<8x512xf32>
    %34 = arith.mulf %31, %33 : vector<8x512xf32>
    %35 = arith.addf %27, %34 : vector<8x512xf32>
    %c3 = arith.constant 3 : index
    %c0_17 = arith.constant 0 : index
    %36 = vector.load %arg5[%c3, %c0_17] : memref<9x512xf32, #tpu.memory_space<vmem>>, vector<1x512xf32>
    %37 = vector.shape_cast %36 : vector<1x512xf32> to vector<512xf32>
    %38 = vector.extract_strided_slice %28 {offsets = [1, 0], sizes = [8, 512], strides = [1, 1]} : vector<10x512xf32> to vector<8x512xf32>
    %39 = vector.shape_cast %37 : vector<512xf32> to vector<1x512xf32>
    %40 = vector.broadcast %39 : vector<1x512xf32> to vector<8x512xf32>
    %41 = arith.mulf %38, %40 : vector<8x512xf32>
    %42 = arith.addf %35, %41 : vector<8x512xf32>
    %c6 = arith.constant 6 : index
    %c0_18 = arith.constant 0 : index
    %43 = vector.load %arg5[%c6, %c0_18] : memref<9x512xf32, #tpu.memory_space<vmem>>, vector<1x512xf32>
    %44 = vector.shape_cast %43 : vector<1x512xf32> to vector<512xf32>
    %45 = vector.extract_strided_slice %28 {offsets = [2, 0], sizes = [8, 512], strides = [1, 1]} : vector<10x512xf32> to vector<8x512xf32>
    %46 = vector.shape_cast %44 : vector<512xf32> to vector<1x512xf32>
    %47 = vector.broadcast %46 : vector<1x512xf32> to vector<8x512xf32>
    %48 = arith.mulf %45, %47 : vector<8x512xf32>
    %49 = arith.addf %42, %48 : vector<8x512xf32>
    %50 = vector.extract_strided_slice %24 {offsets = [0, 128], sizes = [10, 512], strides = [1, 1]} : vector<10x768xf32> to vector<10x512xf32>
    %c1_19 = arith.constant 1 : index
    %c0_20 = arith.constant 0 : index
    %51 = vector.load %arg5[%c1_19, %c0_20] : memref<9x512xf32, #tpu.memory_space<vmem>>, vector<1x512xf32>
    %52 = vector.shape_cast %51 : vector<1x512xf32> to vector<512xf32>
    %53 = vector.extract_strided_slice %50 {offsets = [0, 0], sizes = [8, 512], strides = [1, 1]} : vector<10x512xf32> to vector<8x512xf32>
    %54 = vector.shape_cast %52 : vector<512xf32> to vector<1x512xf32>
    %55 = vector.broadcast %54 : vector<1x512xf32> to vector<8x512xf32>
    %56 = arith.mulf %53, %55 : vector<8x512xf32>
    %57 = arith.addf %49, %56 : vector<8x512xf32>
    %c4 = arith.constant 4 : index
    %c0_21 = arith.constant 0 : index
    %58 = vector.load %arg5[%c4, %c0_21] : memref<9x512xf32, #tpu.memory_space<vmem>>, vector<1x512xf32>
    %59 = vector.shape_cast %58 : vector<1x512xf32> to vector<512xf32>
    %60 = vector.extract_strided_slice %50 {offsets = [1, 0], sizes = [8, 512], strides = [1, 1]} : vector<10x512xf32> to vector<8x512xf32>
    %61 = vector.shape_cast %59 : vector<512xf32> to vector<1x512xf32>
    %62 = vector.broadcast %61 : vector<1x512xf32> to vector<8x512xf32>
    %63 = arith.mulf %60, %62 : vector<8x512xf32>
    %64 = arith.addf %57, %63 : vector<8x512xf32>
    %c7 = arith.constant 7 : index
    %c0_22 = arith.constant 0 : index
    %65 = vector.load %arg5[%c7, %c0_22] : memref<9x512xf32, #tpu.memory_space<vmem>>, vector<1x512xf32>
    %66 = vector.shape_cast %65 : vector<1x512xf32> to vector<512xf32>
    %67 = vector.extract_strided_slice %50 {offsets = [2, 0], sizes = [8, 512], strides = [1, 1]} : vector<10x512xf32> to vector<8x512xf32>
    %68 = vector.shape_cast %66 : vector<512xf32> to vector<1x512xf32>
    %69 = vector.broadcast %68 : vector<1x512xf32> to vector<8x512xf32>
    %70 = arith.mulf %67, %69 : vector<8x512xf32>
    %71 = arith.addf %64, %70 : vector<8x512xf32>
    %72 = vector.extract_strided_slice %24 {offsets = [0, 160], sizes = [10, 512], strides = [1, 1]} : vector<10x768xf32> to vector<10x512xf32>
    %c2 = arith.constant 2 : index
    %c0_23 = arith.constant 0 : index
    %73 = vector.load %arg5[%c2, %c0_23] : memref<9x512xf32, #tpu.memory_space<vmem>>, vector<1x512xf32>
    %74 = vector.shape_cast %73 : vector<1x512xf32> to vector<512xf32>
    %75 = vector.extract_strided_slice %72 {offsets = [0, 0], sizes = [8, 512], strides = [1, 1]} : vector<10x512xf32> to vector<8x512xf32>
    %76 = vector.shape_cast %74 : vector<512xf32> to vector<1x512xf32>
    %77 = vector.broadcast %76 : vector<1x512xf32> to vector<8x512xf32>
    %78 = arith.mulf %75, %77 : vector<8x512xf32>
    %79 = arith.addf %71, %78 : vector<8x512xf32>
    %c5 = arith.constant 5 : index
    %c0_24 = arith.constant 0 : index
    %80 = vector.load %arg5[%c5, %c0_24] : memref<9x512xf32, #tpu.memory_space<vmem>>, vector<1x512xf32>
    %81 = vector.shape_cast %80 : vector<1x512xf32> to vector<512xf32>
    %82 = vector.extract_strided_slice %72 {offsets = [1, 0], sizes = [8, 512], strides = [1, 1]} : vector<10x512xf32> to vector<8x512xf32>
    %83 = vector.shape_cast %81 : vector<512xf32> to vector<1x512xf32>
    %84 = vector.broadcast %83 : vector<1x512xf32> to vector<8x512xf32>
    %85 = arith.mulf %82, %84 : vector<8x512xf32>
    %86 = arith.addf %79, %85 : vector<8x512xf32>
    %c8 = arith.constant 8 : index
    %c0_25 = arith.constant 0 : index
    %87 = vector.load %arg5[%c8, %c0_25] : memref<9x512xf32, #tpu.memory_space<vmem>>, vector<1x512xf32>
    %88 = vector.shape_cast %87 : vector<1x512xf32> to vector<512xf32>
    %89 = vector.extract_strided_slice %72 {offsets = [2, 0], sizes = [8, 512], strides = [1, 1]} : vector<10x512xf32> to vector<8x512xf32>
    %90 = vector.shape_cast %88 : vector<512xf32> to vector<1x512xf32>
    %91 = vector.broadcast %90 : vector<1x512xf32> to vector<8x512xf32>
    %92 = arith.mulf %89, %91 : vector<8x512xf32>
    %93 = arith.addf %86, %92 : vector<8x512xf32>
    %c0_26 = arith.constant 0 : index
    %94 = arith.index_cast %22 : i32 to index
    %c0_27 = arith.constant 0 : index
    %95 = vector.load %arg7[%c0_26, %94, %c0_27] : memref<1x16x512xf32, #tpu.memory_space<vmem>>, vector<1x8x512xf32>
    %96 = vector.shape_cast %95 : vector<1x8x512xf32> to vector<8x512xf32>
    %97 = vector.shape_cast %93 : vector<8x512xf32> to vector<1x8x512xf32>
    tpu.vector_store %arg7[%c0_26, %94, %c0_27], %97 {strides = array<i32>} : memref<1x16x512xf32, #tpu.memory_space<vmem>>, vector<1x8x512xf32>,
    %c1_i32_28 = arith.constant 1 : i32
    %c8_i32_29 = arith.constant 8 : i32
    %98 = arith.muli %c1_i32_28, %c8_i32_29 : i32
    %99 = tpu.assume_multiple %98, 8 : i32
    %100 = arith.index_cast %99 : i32 to index
    %c0_30 = arith.constant 0 : index
    %101 = vector.load %arg8[%100, %c0_30] : memref<18x768xf32, #tpu.memory_space<vmem>>, vector<10x768xf32>
    %102 = vector.shape_cast %20 : vector<512xf32> to vector<1x512xf32>
    %103 = vector.shape_cast %102 : vector<1x512xf32> to vector<1x512xf32>
    %104 = vector.broadcast %103 : vector<1x512xf32> to vector<8x512xf32>
    %105 = vector.extract_strided_slice %101 {offsets = [0, 96], sizes = [10, 512], strides = [1, 1]} : vector<10x768xf32> to vector<10x512xf32>
    %c0_31 = arith.constant 0 : index
    %c0_32 = arith.constant 0 : index
    %106 = vector.load %arg5[%c0_31, %c0_32] : memref<9x512xf32, #tpu.memory_space<vmem>>, vector<1x512xf32>
    %107 = vector.shape_cast %106 : vector<1x512xf32> to vector<512xf32>
    %108 = vector.extract_strided_slice %105 {offsets = [0, 0], sizes = [8, 512], strides = [1, 1]} : vector<10x512xf32> to vector<8x512xf32>
    %109 = vector.shape_cast %107 : vector<512xf32> to vector<1x512xf32>
    %110 = vector.broadcast %109 : vector<1x512xf32> to vector<8x512xf32>
    %111 = arith.mulf %108, %110 : vector<8x512xf32>
    %112 = arith.addf %104, %111 : vector<8x512xf32>
    %c3_33 = arith.constant 3 : index
    %c0_34 = arith.constant 0 : index
    %113 = vector.load %arg5[%c3_33, %c0_34] : memref<9x512xf32, #tpu.memory_space<vmem>>, vector<1x512xf32>
    %114 = vector.shape_cast %113 : vector<1x512xf32> to vector<512xf32>
    %115 = vector.extract_strided_slice %105 {offsets = [1, 0], sizes = [8, 512], strides = [1, 1]} : vector<10x512xf32> to vector<8x512xf32>
    %116 = vector.shape_cast %114 : vector<512xf32> to vector<1x512xf32>
    %117 = vector.broadcast %116 : vector<1x512xf32> to vector<8x512xf32>
    %118 = arith.mulf %115, %117 : vector<8x512xf32>
    %119 = arith.addf %112, %118 : vector<8x512xf32>
    %c6_35 = arith.constant 6 : index
    %c0_36 = arith.constant 0 : index
    %120 = vector.load %arg5[%c6_35, %c0_36] : memref<9x512xf32, #tpu.memory_space<vmem>>, vector<1x512xf32>
    %121 = vector.shape_cast %120 : vector<1x512xf32> to vector<512xf32>
    %122 = vector.extract_strided_slice %105 {offsets = [2, 0], sizes = [8, 512], strides = [1, 1]} : vector<10x512xf32> to vector<8x512xf32>
    %123 = vector.shape_cast %121 : vector<512xf32> to vector<1x512xf32>
    %124 = vector.broadcast %123 : vector<1x512xf32> to vector<8x512xf32>
    %125 = arith.mulf %122, %124 : vector<8x512xf32>
    %126 = arith.addf %119, %125 : vector<8x512xf32>
    %127 = vector.extract_strided_slice %101 {offsets = [0, 128], sizes = [10, 512], strides = [1, 1]} : vector<10x768xf32> to vector<10x512xf32>
    %c1_37 = arith.constant 1 : index
    %c0_38 = arith.constant 0 : index
    %128 = vector.load %arg5[%c1_37, %c0_38] : memref<9x512xf32, #tpu.memory_space<vmem>>, vector<1x512xf32>
    %129 = vector.shape_cast %128 : vector<1x512xf32> to vector<512xf32>
    %130 = vector.extract_strided_slice %127 {offsets = [0, 0], sizes = [8, 512], strides = [1, 1]} : vector<10x512xf32> to vector<8x512xf32>
    %131 = vector.shape_cast %129 : vector<512xf32> to vector<1x512xf32>
    %132 = vector.broadcast %131 : vector<1x512xf32> to vector<8x512xf32>
    %133 = arith.mulf %130, %132 : vector<8x512xf32>
    %134 = arith.addf %126, %133 : vector<8x512xf32>
    %c4_39 = arith.constant 4 : index
    %c0_40 = arith.constant 0 : index
    %135 = vector.load %arg5[%c4_39, %c0_40] : memref<9x512xf32, #tpu.memory_space<vmem>>, vector<1x512xf32>
    %136 = vector.shape_cast %135 : vector<1x512xf32> to vector<512xf32>
    %137 = vector.extract_strided_slice %127 {offsets = [1, 0], sizes = [8, 512], strides = [1, 1]} : vector<10x512xf32> to vector<8x512xf32>
    %138 = vector.shape_cast %136 : vector<512xf32> to vector<1x512xf32>
    %139 = vector.broadcast %138 : vector<1x512xf32> to vector<8x512xf32>
    %140 = arith.mulf %137, %139 : vector<8x512xf32>
    %141 = arith.addf %134, %140 : vector<8x512xf32>
    %c7_41 = arith.constant 7 : index
    %c0_42 = arith.constant 0 : index
    %142 = vector.load %arg5[%c7_41, %c0_42] : memref<9x512xf32, #tpu.memory_space<vmem>>, vector<1x512xf32>
    %143 = vector.shape_cast %142 : vector<1x512xf32> to vector<512xf32>
    %144 = vector.extract_strided_slice %127 {offsets = [2, 0], sizes = [8, 512], strides = [1, 1]} : vector<10x512xf32> to vector<8x512xf32>
    %145 = vector.shape_cast %143 : vector<512xf32> to vector<1x512xf32>
    %146 = vector.broadcast %145 : vector<1x512xf32> to vector<8x512xf32>
    %147 = arith.mulf %144, %146 : vector<8x512xf32>
    %148 = arith.addf %141, %147 : vector<8x512xf32>
    %149 = vector.extract_strided_slice %101 {offsets = [0, 160], sizes = [10, 512], strides = [1, 1]} : vector<10x768xf32> to vector<10x512xf32>
    %c2_43 = arith.constant 2 : index
    %c0_44 = arith.constant 0 : index
    %150 = vector.load %arg5[%c2_43, %c0_44] : memref<9x512xf32, #tpu.memory_space<vmem>>, vector<1x512xf32>
    %151 = vector.shape_cast %150 : vector<1x512xf32> to vector<512xf32>
    %152 = vector.extract_strided_slice %149 {offsets = [0, 0], sizes = [8, 512], strides = [1, 1]} : vector<10x512xf32> to vector<8x512xf32>
    %153 = vector.shape_cast %151 : vector<512xf32> to vector<1x512xf32>
    %154 = vector.broadcast %153 : vector<1x512xf32> to vector<8x512xf32>
    %155 = arith.mulf %152, %154 : vector<8x512xf32>
    %156 = arith.addf %148, %155 : vector<8x512xf32>
    %c5_45 = arith.constant 5 : index
    %c0_46 = arith.constant 0 : index
    %157 = vector.load %arg5[%c5_45, %c0_46] : memref<9x512xf32, #tpu.memory_space<vmem>>, vector<1x512xf32>
    %158 = vector.shape_cast %157 : vector<1x512xf32> to vector<512xf32>
    %159 = vector.extract_strided_slice %149 {offsets = [1, 0], sizes = [8, 512], strides = [1, 1]} : vector<10x512xf32> to vector<8x512xf32>
    %160 = vector.shape_cast %158 : vector<512xf32> to vector<1x512xf32>
    %161 = vector.broadcast %160 : vector<1x512xf32> to vector<8x512xf32>
    %162 = arith.mulf %159, %161 : vector<8x512xf32>
    %163 = arith.addf %156, %162 : vector<8x512xf32>
    %c8_47 = arith.constant 8 : index
    %c0_48 = arith.constant 0 : index
    %164 = vector.load %arg5[%c8_47, %c0_48] : memref<9x512xf32, #tpu.memory_space<vmem>>, vector<1x512xf32>
    %165 = vector.shape_cast %164 : vector<1x512xf32> to vector<512xf32>
    %166 = vector.extract_strided_slice %149 {offsets = [2, 0], sizes = [8, 512], strides = [1, 1]} : vector<10x512xf32> to vector<8x512xf32>
    %167 = vector.shape_cast %165 : vector<512xf32> to vector<1x512xf32>
    %168 = vector.broadcast %167 : vector<1x512xf32> to vector<8x512xf32>
    %169 = arith.mulf %166, %168 : vector<8x512xf32>
    %170 = arith.addf %163, %169 : vector<8x512xf32>
    %c0_49 = arith.constant 0 : index
    %171 = arith.index_cast %99 : i32 to index
    %c0_50 = arith.constant 0 : index
    %172 = vector.load %arg7[%c0_49, %171, %c0_50] : memref<1x16x512xf32, #tpu.memory_space<vmem>>, vector<1x8x512xf32>
    %173 = vector.shape_cast %172 : vector<1x8x512xf32> to vector<8x512xf32>
    %174 = vector.shape_cast %170 : vector<8x512xf32> to vector<1x8x512xf32>
    tpu.vector_store %arg7[%c0_49, %171, %c0_50], %174 {strides = array<i32>} : memref<1x16x512xf32, #tpu.memory_space<vmem>>, vector<1x8x512xf32>,
    %c2_i32 = arith.constant 2 : i32
    return
  }
  func.func @transform_0(%arg0: i32, %arg1: i32) -> (i32, i32, i32) {
    %c0_i32 = arith.constant 0 : i32
    %c0_i32_0 = arith.constant 0 : i32
    return %arg0, %arg1, %c0_i32 : i32, i32, i32
  }
  func.func @transform_1(%arg0: i32, %arg1: i32) -> (i32, i32, i32) {
    %c32_i32 = arith.constant 32 : i32
    %0 = arith.muli %arg0, %c32_i32 : i32
    %c16_i32 = arith.constant 16 : i32
    %1 = arith.muli %arg1, %c16_i32 : i32
    %c1_i32 = arith.constant 1 : i32
    %2 = arith.subi %1, %c1_i32 : i32
    %c0_i32 = arith.constant 0 : i32
    %3 = arith.maxsi %2, %c0_i32 : i32
    %4 = arith.addi %0, %3 : i32
    %c0_i32_0 = arith.constant 0 : i32
    %c0_i32_1 = arith.constant 0 : i32
    %c0_i32_2 = arith.constant 0 : i32
    return %4, %c0_i32_0, %c0_i32_1 : i32, i32, i32
  }
  func.func @transform_2(%arg0: i32, %arg1: i32) -> (i32, i32, i32) {
    %c32_i32 = arith.constant 32 : i32
    %0 = arith.muli %arg0, %c32_i32 : i32
    %c16_i32 = arith.constant 16 : i32
    %1 = arith.muli %arg1, %c16_i32 : i32
    %c16_i32_0 = arith.constant 16 : i32
    %2 = arith.addi %1, %c16_i32_0 : i32
    %c31_i32 = arith.constant 31 : i32
    %3 = arith.minsi %2, %c31_i32 : i32
    %4 = arith.addi %0, %3 : i32
    %c0_i32 = arith.constant 0 : i32
    %c0_i32_1 = arith.constant 0 : i32
    %c0_i32_2 = arith.constant 0 : i32
    return %4, %c0_i32, %c0_i32_1 : i32, i32, i32
  }
  func.func @transform_3(%arg0: i32, %arg1: i32) -> (i32, i32) {
    %c0_i32 = arith.constant 0 : i32
    %c0_i32_0 = arith.constant 0 : i32
    %c0_i32_1 = arith.constant 0 : i32
    return %c0_i32, %c0_i32_0 : i32, i32
  }
  func.func @transform_4(%arg0: i32, %arg1: i32) -> (i32, i32) {
    %c0_i32 = arith.constant 0 : i32
    %c0_i32_0 = arith.constant 0 : i32
    %c0_i32_1 = arith.constant 0 : i32
    return %c0_i32, %c0_i32_0 : i32, i32
  }
  func.func @transform_5(%arg0: i32, %arg1: i32) -> (i32, i32, i32) {
    %c0_i32 = arith.constant 0 : i32
    %c0_i32_0 = arith.constant 0 : i32
    return %arg0, %arg1, %c0_i32 : i32, i32, i32
  }
}

</mosaic_0001>

<llo_original>
// kernel: tile.11
$region0: #{tile.11}
  %s0 = inlined_call_operand.vmem [shape: f32[9,16,32], index: 0, kind: input, shape index: {}]
  %s1 = inlined_call_operand.vmem [shape: f32[9,512], index: 1, kind: output, shape index: {}]
  %v2 = vld [vmem:[%s0] ss:$4 sm:$0xff]
  %vm3 = vcmask 261120
  %4 = vst.msk [vmem:[%s1] ss:$8 sm:$0xf] %vm3, %v2
  %s5 = scalar_lea.vmem %s1, 4294967265
  %6 = vst.msk [vmem:[%s5] ss:$8 sm:$0xf0] %vm3, %v2
  %s7 = scalar_lea.vmem %s0, 32
  %v8 = vld [vmem:[%s7] ss:$4 sm:$0xff]
  %vm9 = vcmask 261120
  %s10 = scalar_lea.vmem %s1, 2
  %11 = vst.msk [vmem:[%s10] ss:$8 sm:$0xf] %vm9, %v8
  %s12 = scalar_lea.vmem %s1, 4294967267
  %13 = vst.msk [vmem:[%s12] ss:$8 sm:$0xf0] %vm9, %v8
  %s14 = scalar_lea.vmem %s0, 64
  %v15 = vld [vmem:[%s14] ss:$4 sm:$0xff]
  %vm16 = vcmask 261120
  %s17 = scalar_lea.vmem %s1, 4
  %18 = vst.msk [vmem:[%s17] ss:$8 sm:$0xf] %vm16, %v15
  %s19 = scalar_lea.vmem %s1, 4294967269
  %20 = vst.msk [vmem:[%s19] ss:$8 sm:$0xf0] %vm16, %v15
  %s21 = scalar_lea.vmem %s0, 96
  %v22 = vld [vmem:[%s21] ss:$4 sm:$0xff]
  %vm23 = vcmask 261120
  %s24 = scalar_lea.vmem %s1, 6
  %25 = vst.msk [vmem:[%s24] ss:$8 sm:$0xf] %vm23, %v22
  %s26 = scalar_lea.vmem %s1, 4294967271
  %27 = vst.msk [vmem:[%s26] ss:$8 sm:$0xf0] %vm23, %v22
  %s28 = scalar_lea.vmem %s0, 128
  %v29 = vld [vmem:[%s28] ss:$4 sm:$0xf]
  %vm30 = vcmask 261120
  %s31 = scalar_lea.vmem %s1, 32
  %32 = vst.msk [vmem:[%s31] ss:$8 sm:$0xf] %vm30, %v29
  %s33 = scalar_lea.vmem %s0, 3
  %s34 = smov 3
  %v35 = vld [vmem:[%s33] ss:$16 sm:%s34]
  %s36 = scalar_lea.vmem %s0, 3
  %s37 = smov 12
  %v38 = vld [vmem:[%s36] ss:$16 sm:%s37]
  %vm39 = vcmask 1043458
  %v40 = vsel %vm39, %v38, %v35
  %s41 = scalar_lea.vmem %s0, 3
  %s42 = smov 48
  %v43 = vld [vmem:[%s41] ss:$16 sm:%s42]
  %vm44 = vcmask 1045508
  %v45 = vsel %vm44, %v43, %v40
  %s46 = scalar_lea.vmem %s0, 3
  %s47 = smov 192
  %v48 = vld [vmem:[%s46] ss:$16 sm:%s47]
  %vm49 = vcmask 1047558
  %v50 = vsel %vm49, %v48, %v45
  %51 = vrot.lane.b32.xlu0 %v50, 96
  %v52 = vpop.permute.xlu0 %51
  %vm53 = vcmask 1048320
  %54 = vst.msk [vmem:[%s1] sm:$0xff] %vm53, %v52
  %s55 = scalar_lea.vmem %s0, 131
  %s56 = smov 3
  %v57 = vld [vmem:[%s55] ss:$-124 sm:%s56]
  %s58 = scalar_lea.vmem %s0, 4294967287
  %s59 = smov 12
  %v60 = vld [vmem:[%s58] ss:$16 sm:%s59]
  %vm61 = vcmask 1043458
  %v62 = vsel %vm61, %v60, %v57
  %s63 = scalar_lea.vmem %s0, 4294967287
  %s64 = smov 48
  %v65 = vld [vmem:[%s63] ss:$16 sm:%s64]
  %vm66 = vcmask 1045508
  %v67 = vsel %vm66, %v65, %v62
  %s68 = scalar_lea.vmem %s0, 4294967287
  %s69 = smov 192
  %v70 = vld [vmem:[%s68] ss:$16 sm:%s69]
  %vm71 = vcmask 1047558
  %v72 = vsel %vm71, %v70, %v67
  %73 = vrot.lane.b32.xlu0 %v72, 96
  %v74 = vpop.permute.xlu0 %73
  %vm75 = vcmask 1048320
  %s76 = scalar_lea.vmem %s1, 32
  %77 = vst.msk [vmem:[%s76] ss:$-24 sm:$0x3] %vm75, %v74
  %s78 = scalar_lea.vmem %s1, 7
  %79 = vst.msk [vmem:[%s78] sm:$0xfc] %vm75, %v74
  %s80 = scalar_lea.vmem %s0, 135
  %s81 = smov 3
  %v82 = vld [vmem:[%s80] ss:$-16 sm:%s81]
  %s83 = scalar_lea.vmem %s0, 4294967275
  %s84 = smov 12
  %v85 = vld [vmem:[%s83] ss:$16 sm:%s84]
  %vm86 = vcmask 1043458
  %v87 = vsel %vm86, %v85, %v82
  %s88 = scalar_lea.vmem %s0, 4294967275
  %s89 = smov 48
  %v90 = vld [vmem:[%s88] ss:$16 sm:%s89]
  %vm91 = vcmask 1045508
  %v92 = vsel %vm91, %v90, %v87
  %s93 = scalar_lea.vmem %s0, 4294967275
  %s94 = smov 192
  %v95 = vld [vmem:[%s93] ss:$16 sm:%s94]
  %vm96 = vcmask 1047558
  %v97 = vsel %vm96, %v95, %v92
  %98 = vrot.lane.b32.xlu0 %v97, 96
  %v99 = vpop.permute.xlu0 %98
  %vm100 = vcmask 1048320
  %s101 = scalar_lea.vmem %s1, 40
  %102 = vst.msk [vmem:[%s101] ss:$-25 sm:$0x3] %vm100, %v99
  %s103 = scalar_lea.vmem %s1, 14
  %104 = vst.msk [vmem:[%s103] sm:$0xfc] %vm100, %v99
  %s105 = scalar_lea.vmem %s0, 139
  %v106 = vld [vmem:[%s105] sm:$0x1]
  %s107 = scalar_lea.vmem %s0, 91
  %s108 = smov 6
  %v109 = vld [vmem:[%s107] ss:$16 sm:%s108]
  %vm110 = vcmask 1042433
  %v111 = vsel %vm110, %v109, %v106
  %s112 = scalar_lea.vmem %s0, 4294967263
  %s113 = smov 24
  %v114 = vld [vmem:[%s112] ss:$16 sm:%s113]
  %vm115 = vcmask 1044483
  %v116 = vsel %vm115, %v114, %v111
  %s117 = scalar_lea.vmem %s0, 4294967263
  %s118 = smov 96
  %v119 = vld [vmem:[%s117] ss:$16 sm:%s118]
  %vm120 = vcmask 1046533
  %v121 = vsel %vm120, %v119, %v116
  %s122 = scalar_lea.vmem %s0, 72
  %v123 = vld [vmem:[%s122] sm:$0x80]
  %vm124 = vcmask 1047559
  %v125 = vsel %vm124, %v123, %v121
  %126 = vrot.lane.b32.xlu0 %v125, 96
  %v127 = vpop.permute.xlu0 %126
  %vm128 = vcmask 1048320
  %s129 = scalar_lea.vmem %s1, 48
  %130 = vst.msk [vmem:[%s129] ss:$-26 sm:$0x3] %vm128, %v127
  %s131 = scalar_lea.vmem %s1, 21
  %132 = vst.msk [vmem:[%s131] sm:$0xfc] %vm128, %v127
  %s133 = scalar_lea.vmem %s0, 143
  %s134 = smov 3
  %v135 = vld [vmem:[%s133] ss:$-48 sm:%s134]
  %s136 = scalar_lea.vmem %s0, 79
  %s137 = smov 12
  %v138 = vld [vmem:[%s136] ss:$16 sm:%s137]
  %vm139 = vcmask 1043458
  %v140 = vsel %vm139, %v138, %v135
  %141 = vrot.lane.b32.xlu0 %v140, 96
  %v142 = vpop.permute.xlu0 %141
  %vm143 = vcmask 1048320
  %s144 = scalar_lea.vmem %s1, 56
  %145 = vst.msk [vmem:[%s144] ss:$-27 sm:$0x3] %vm143, %v142
  %s146 = scalar_lea.vmem %s1, 28
  %147 = vst.msk [vmem:[%s146] sm:$0xc] %vm143, %v142
  %s148 = scalar_lea.vmem %s0, 2
  %s149 = smov 3
  %v150 = vld [vmem:[%s148] ss:$16 sm:%s149]
  %s151 = scalar_lea.vmem %s0, 2
  %s152 = smov 12
  %v153 = vld [vmem:[%s151] ss:$16 sm:%s152]
  %vm154 = vcmask 1043458
  %v155 = vsel %vm154, %v153, %v150
  %s156 = scalar_lea.vmem %s0, 2
  %s157 = smov 48
  %v158 = vld [vmem:[%s156] ss:$16 sm:%s157]
  %vm159 = vcmask 1045508
  %v160 = vsel %vm159, %v158, %v155
  %s161 = scalar_lea.vmem %s0, 2
  %s162 = smov 192
  %v163 = vld [vmem:[%s161] ss:$16 sm:%s162]
  %vm164 = vcmask 1047558
  %v165 = vsel %vm164, %v163, %v160
  %166 = vrot.lane.b32.xlu0 %v165, 64
  %v167 = vpop.permute.xlu0 %166
  %vm168 = vcmask 785920
  %169 = vst.msk [vmem:[%s1] sm:$0xff] %vm168, %v167
  %s170 = scalar_lea.vmem %s0, 130
  %s171 = smov 3
  %v172 = vld [vmem:[%s170] ss:$-124 sm:%s171]
  %s173 = scalar_lea.vmem %s0, 4294967286
  %s174 = smov 12
  %v175 = vld [vmem:[%s173] ss:$16 sm:%s174]
  %vm176 = vcmask 1043458
  %v177 = vsel %vm176, %v175, %v172
  %s178 = scalar_lea.vmem %s0, 4294967286
  %s179 = smov 48
  %v180 = vld [vmem:[%s178] ss:$16 sm:%s179]
  %vm181 = vcmask 1045508
  %v182 = vsel %vm181, %v180, %v177
  %s183 = scalar_lea.vmem %s0, 4294967286
  %s184 = smov 192
  %v185 = vld [vmem:[%s183] ss:$16 sm:%s184]
  %vm186 = vcmask 1047558
  %v187 = vsel %vm186, %v185, %v182
  %188 = vrot.lane.b32.xlu0 %v187, 64
  %v189 = vpop.permute.xlu0 %188
  %vm190 = vcmask 785920
  %s191 = scalar_lea.vmem %s1, 32
  %192 = vst.msk [vmem:[%s191] ss:$-24 sm:$0x3] %vm190, %v189
  %s193 = scalar_lea.vmem %s1, 7
  %194 = vst.msk [vmem:[%s193] sm:$0xfc] %vm190, %v189
  %s195 = scalar_lea.vmem %s0, 134
  %s196 = smov 3
  %v197 = vld [vmem:[%s195] ss:$-16 sm:%s196]
  %s198 = scalar_lea.vmem %s0, 4294967274
  %s199 = smov 12
  %v200 = vld [vmem:[%s198] ss:$16 sm:%s199]
  %vm201 = vcmask 1043458
  %v202 = vsel %vm201, %v200, %v197
  %s203 = scalar_lea.vmem %s0, 4294967274
  %s204 = smov 48
  %v205 = vld [vmem:[%s203] ss:$16 sm:%s204]
  %vm206 = vcmask 1045508
  %v207 = vsel %vm206, %v205, %v202
  %s208 = scalar_lea.vmem %s0, 4294967274
  %s209 = smov 192
  %v210 = vld [vmem:[%s208] ss:$16 sm:%s209]
  %vm211 = vcmask 1047558
  %v212 = vsel %vm211, %v210, %v207
  %213 = vrot.lane.b32.xlu0 %v212, 64
  %v214 = vpop.permute.xlu0 %213
  %vm215 = vcmask 785920
  %s216 = scalar_lea.vmem %s1, 40
  %217 = vst.msk [vmem:[%s216] ss:$-25 sm:$0x3] %vm215, %v214
  %s218 = scalar_lea.vmem %s1, 14
  %219 = vst.msk [vmem:[%s218] sm:$0xfc] %vm215, %v214
  %s220 = scalar_lea.vmem %s0, 138
  %v221 = vld [vmem:[%s220] sm:$0x1]
  %s222 = scalar_lea.vmem %s0, 90
  %s223 = smov 6
  %v224 = vld [vmem:[%s222] ss:$16 sm:%s223]
  %vm225 = vcmask 1042433
  %v226 = vsel %vm225, %v224, %v221
  %s227 = scalar_lea.vmem %s0, 4294967262
  %s228 = smov 24
  %v229 = vld [vmem:[%s227] ss:$16 sm:%s228]
  %vm230 = vcmask 1044483
  %v231 = vsel %vm230, %v229, %v226
  %s232 = scalar_lea.vmem %s0, 4294967262
  %s233 = smov 96
  %v234 = vld [vmem:[%s232] ss:$16 sm:%s233]
  %vm235 = vcmask 1046533
  %v236 = vsel %vm235, %v234, %v231
  %s237 = scalar_lea.vmem %s0, 71
  %v238 = vld [vmem:[%s237] sm:$0x80]
  %vm239 = vcmask 1047559
  %v240 = vsel %vm239, %v238, %v236
  %241 = vrot.lane.b32.xlu0 %v240, 64
  %v242 = vpop.permute.xlu0 %241
  %vm243 = vcmask 785920
  %s244 = scalar_lea.vmem %s1, 48
  %245 = vst.msk [vmem:[%s244] ss:$-26 sm:$0x3] %vm243, %v242
  %s246 = scalar_lea.vmem %s1, 21
  %247 = vst.msk [vmem:[%s246] sm:$0xfc] %vm243, %v242
  %s248 = scalar_lea.vmem %s0, 142
  %s249 = smov 3
  %v250 = vld [vmem:[%s248] ss:$-48 sm:%s249]
  %s251 = scalar_lea.vmem %s0, 78
  %s252 = smov 12
  %v253 = vld [vmem:[%s251] ss:$16 sm:%s252]
  %vm254 = vcmask 1043458
  %v255 = vsel %vm254, %v253, %v250
  %256 = vrot.lane.b32.xlu0 %v255, 64
  %v257 = vpop.permute.xlu0 %256
  %vm258 = vcmask 785920
  %s259 = scalar_lea.vmem %s1, 56
  %260 = vst.msk [vmem:[%s259] ss:$-27 sm:$0x3] %vm258, %v257
  %s261 = scalar_lea.vmem %s1, 28
  %262 = vst.msk [vmem:[%s261] sm:$0xc] %vm258, %v257
  %s263 = scalar_lea.vmem %s0, 1
  %s264 = smov 3
  %v265 = vld [vmem:[%s263] ss:$16 sm:%s264]
  %s266 = scalar_lea.vmem %s0, 1
  %s267 = smov 12
  %v268 = vld [vmem:[%s266] ss:$16 sm:%s267]
  %vm269 = vcmask 1043458
  %v270 = vsel %vm269, %v268, %v265
  %s271 = scalar_lea.vmem %s0, 1
  %s272 = smov 48
  %v273 = vld [vmem:[%s271] ss:$16 sm:%s272]
  %vm274 = vcmask 1045508
  %v275 = vsel %vm274, %v273, %v270
  %s276 = scalar_lea.vmem %s0, 1
  %s277 = smov 192
  %v278 = vld [vmem:[%s276] ss:$16 sm:%s277]
  %vm279 = vcmask 1047558
  %v280 = vsel %vm279, %v278, %v275
  %281 = vrot.lane.b32.xlu0 %v280, 32
  %v282 = vpop.permute.xlu0 %281
  %vm283 = vcmask 523520
  %284 = vst.msk [vmem:[%s1] sm:$0xff] %vm283, %v282
  %s285 = scalar_lea.vmem %s0, 129
  %s286 = smov 3
  %v287 = vld [vmem:[%s285] ss:$-124 sm:%s286]
  %s288 = scalar_lea.vmem %s0, 4294967285
  %s289 = smov 12
  %v290 = vld [vmem:[%s288] ss:$16 sm:%s289]
  %vm291 = vcmask 1043458
  %v292 = vsel %vm291, %v290, %v287
  %s293 = scalar_lea.vmem %s0, 4294967285
  %s294 = smov 48
  %v295 = vld [vmem:[%s293] ss:$16 sm:%s294]
  %vm296 = vcmask 1045508
  %v297 = vsel %vm296, %v295, %v292
  %s298 = scalar_lea.vmem %s0, 4294967285
  %s299 = smov 192
  %v300 = vld [vmem:[%s298] ss:$16 sm:%s299]
  %vm301 = vcmask 1047558
  %v302 = vsel %vm301, %v300, %v297
  %303 = vrot.lane.b32.xlu0 %v302, 32
  %v304 = vpop.permute.xlu0 %303
  %vm305 = vcmask 523520
  %s306 = scalar_lea.vmem %s1, 32
  %307 = vst.msk [vmem:[%s306] ss:$-24 sm:$0x3] %vm305, %v304
  %s308 = scalar_lea.vmem %s1, 7
  %309 = vst.msk [vmem:[%s308] sm:$0xfc] %vm305, %v304
  %s310 = scalar_lea.vmem %s0, 133
  %s311 = smov 3
  %v312 = vld [vmem:[%s310] ss:$-16 sm:%s311]
  %s313 = scalar_lea.vmem %s0, 4294967273
  %s314 = smov 12
  %v315 = vld [vmem:[%s313] ss:$16 sm:%s314]
  %vm316 = vcmask 1043458
  %v317 = vsel %vm316, %v315, %v312
  %s318 = scalar_lea.vmem %s0, 4294967273
  %s319 = smov 48
  %v320 = vld [vmem:[%s318] ss:$16 sm:%s319]
  %vm321 = vcmask 1045508
  %v322 = vsel %vm321, %v320, %v317
  %s323 = scalar_lea.vmem %s0, 4294967273
  %s324 = smov 192
  %v325 = vld [vmem:[%s323] ss:$16 sm:%s324]
  %vm326 = vcmask 1047558
  %v327 = vsel %vm326, %v325, %v322
  %328 = vrot.lane.b32.xlu0 %v327, 32
  %v329 = vpop.permute.xlu0 %328
  %vm330 = vcmask 523520
  %s331 = scalar_lea.vmem %s1, 40
  %332 = vst.msk [vmem:[%s331] ss:$-25 sm:$0x3] %vm330, %v329
  %s333 = scalar_lea.vmem %s1, 14
  %334 = vst.msk [vmem:[%s333] sm:$0xfc] %vm330, %v329
  %s335 = scalar_lea.vmem %s0, 137
  %v336 = vld [vmem:[%s335] sm:$0x1]
  %s337 = scalar_lea.vmem %s0, 89
  %s338 = smov 6
  %v339 = vld [vmem:[%s337] ss:$16 sm:%s338]
  %vm340 = vcmask 1042433
  %v341 = vsel %vm340, %v339, %v336
  %s342 = scalar_lea.vmem %s0, 4294967261
  %s343 = smov 24
  %v344 = vld [vmem:[%s342] ss:$16 sm:%s343]
  %vm345 = vcmask 1044483
  %v346 = vsel %vm345, %v344, %v341
  %s347 = scalar_lea.vmem %s0, 4294967261
  %s348 = smov 96
  %v349 = vld [vmem:[%s347] ss:$16 sm:%s348]
  %vm350 = vcmask 1046533
  %v351 = vsel %vm350, %v349, %v346
  %s352 = scalar_lea.vmem %s0, 70
  %v353 = vld [vmem:[%s352] sm:$0x80]
  %vm354 = vcmask 1047559
  %v355 = vsel %vm354, %v353, %v351
  %356 = vrot.lane.b32.xlu0 %v355, 32
  %v357 = vpop.permute.xlu0 %356
  %vm358 = vcmask 523520
  %s359 = scalar_lea.vmem %s1, 48
  %360 = vst.msk [vmem:[%s359] ss:$-26 sm:$0x3] %vm358, %v357
  %s361 = scalar_lea.vmem %s1, 21
  %362 = vst.msk [vmem:[%s361] sm:$0xfc] %vm358, %v357
  %s363 = scalar_lea.vmem %s0, 141
  %s364 = smov 3
  %v365 = vld [vmem:[%s363] ss:$-48 sm:%s364]
  %s366 = scalar_lea.vmem %s0, 77
  %s367 = smov 12
  %v368 = vld [vmem:[%s366] ss:$16 sm:%s367]
  %vm369 = vcmask 1043458
  %v370 = vsel %vm369, %v368, %v365
  %371 = vrot.lane.b32.xlu0 %v370, 32
  %v372 = vpop.permute.xlu0 %371
  %vm373 = vcmask 523520
  %s374 = scalar_lea.vmem %s1, 56
  %375 = vst.msk [vmem:[%s374] ss:$-27 sm:$0x3] %vm373, %v372
  %s376 = scalar_lea.vmem %s1, 28
  %377 = vst.msk [vmem:[%s376] sm:$0xc] %vm373, %v372

// kernel: dwconv.1
$region0: #{dwconv.1}
  #allocation0 [shape = 'u32[]', space=smem, size = 0x4, offset = 0x4, fixed_abs, tag = 'smem constant byte address 0x4 - core index']
  #allocation1 [shape = 'u32[72,128]{1,0:T(1,128)}', space=vmem, size = 0x9000, scoped, tag = 'internal scratch']
  #allocation2 [shape = 'f32[18,768]{1,0:T(8,128)}', space=vmem, size = 0x12000, scoped, tag = 'scratch operand']
  %s0 = inlined_call_operand.vmem [shape: f32[2,32,512], index: 0, kind: input, shape index: {}]
  %s1 = inlined_call_operand.vmem [shape: f32[64,1,512], index: 1, kind: input, shape index: {}, may-alias: {1,2}]
  %s2 = inlined_call_operand.vmem [shape: f32[64,1,512], index: 2, kind: input, shape index: {}, may-alias: {1,2}]
  %s3 = inlined_call_operand.vmem [shape: f32[9,512], index: 3, kind: input, shape index: {}]
  %s4 = inlined_call_operand.vmem [shape: f32[1,512], index: 4, kind: input, shape index: {}]
  %s5 = inlined_call_operand.vmem [shape: f32[2,32,512], index: 5, kind: output, shape index: {}]
  %s6 = sld [smem:[#allocation0]]
  $region69: #{dwconv.1} parent=0
    _
  %s8 = ssub.s32 1, %s6
  %s9 = scalar_select 0, %s8, %s6
  loop: start=0, step=1, limit=6
  $region2: #{dwconv.1} parent=0 // loop_pre_header
    _
  $region3: #{dwconv.1} parent=0 // loop_header
    %s11 = sphi 0, %s15
    %p12 = scmp.ge.s32.totalorder %s11, 6
    %s18 = sphi 0, %s30
    %s19 = sphi 0, %s26
    %s20 = sphi 0, %s18
    %s21 = sphi 0, %s19
    %s22 = sphi 0, %s20
    %s23 = sphi 0, %s21
    %s35 = sphi 0, %s37
    %s38 = sphi 0, %s35
    %s39 = sphi 0, %s38
    %s55 = sphi 0, %s39
    %s73 = sphi 0, %s75
    %s76 = sphi 0, %s73
    %s77 = sphi 0, %s76
    %s93 = sphi 0, %s77
    %s111 = sphi 0, %s113
    %s114 = sphi 0, %s111
    %s115 = sphi 0, %s114
    %s131 = sphi 0, %s115
    %s135 = sphi 0, %s135
    %s137 = sphi 0, %s135
    %s138 = sphi 0, %s137
    %s152 = sphi 0, %s138
    %s156 = sphi 0, %s156
    %s158 = sphi 0, %s156
    %s159 = sphi 0, %s158
    %s173 = sphi 0, %s159
    %s181 = sphi 0, %s183
    %s184 = sphi 0, %s181
    %s185 = sphi 0, %s184
    %s201 = sphi 0, %s185
  $region4: #{dwconv.1} parent=0 // loop_header_branch
    %14 = sbr.rel (%p12) target = $region8
  $region5: #{dwconv.1} parent=0 // loop_body
    %s16 = ssub.s32 %s11, 1
    %s17 = ssub.s32 %s11, 2
    %s24 = sadd.s32 1, %s19
    %p25 = scmp.ge.s32.totalorder %s24, 2
    %s26 = scalar_select %p25, 0, %s24
    %s27 = sadd.s32 1, %s18
    %s28 = scalar_select %p25, %s27, %s18
    %p29 = scmp.ge.s32.totalorder %s28, 2
    %s30 = scalar_select %p29, 0, %s28
    %s31 = ssub.s32 %s18, %s30
    %s32 = ssub.s32 %s19, %s26
    %s33 = sor.u32 %s31, %s32
    %p34 = scmp.eq.s32.totalorder %s33, 0
    %s36 = sadd.s32 %s35, 1
    %s37 = scalar_select %p34, %s35, %s36
    %p40 = pneg %p34
    %p41 = scmp.eq.s32.totalorder %s11, 3
    %p42 = por %p40, %p41
    %p43 = scmp.ne.s32.totalorder %s35, %s38
    %p44 = scmp.eq.s32.totalorder %s11, 0
    %p45 = por %p43, %p44
    %p46 = scmp.ne.s32.totalorder %s35, %s38
    %p47 = scmp.eq.s32.totalorder %s16, 3
    %p48 = por %p46, %p47
    %p49 = scmp.ne.s32.totalorder %s38, %s39
    %p50 = scmp.eq.s32.totalorder %s16, 0
    %p51 = por %p49, %p50
    %p52 = scmp.ne.s32.totalorder %s38, %s39
    %p53 = scmp.eq.s32.totalorder %s17, 3
    %p54 = por %p52, %p53
    %p56 = scmp.ne.s32.totalorder %s39, %s55
    %p57 = scmp.eq.s32.totalorder %s17, 0
    %p58 = por %p56, %p57
    %s59 = smul.u32 %s18, 32
    %s60 = smul.u32 %s19, 16
    %s61 = ssub.s32 %s60, 1
    %p62 = scmp.gt.s32.totalorder %s61, 0
    %s63 = scalar_select %p62, %s61, 0
    %s64 = sadd.s32 %s59, %s63
    %s65 = smul.u32 %s30, 32
    %s66 = smul.u32 %s26, 16
    %s67 = ssub.s32 %s66, 1
    %p68 = scmp.gt.s32.totalorder %s67, 0
    %s69 = scalar_select %p68, %s67, 0
    %s70 = sadd.s32 %s65, %s69
    %s71 = ssub.s32 %s64, %s70
    %p72 = scmp.eq.s32.totalorder %s71, 0
    %s74 = sadd.s32 %s73, 1
    %s75 = scalar_select %p72, %s73, %s74
    %p78 = pneg %p72
    %p79 = scmp.eq.s32.totalorder %s11, 3
    %p80 = por %p78, %p79
    %p81 = scmp.ne.s32.totalorder %s73, %s76
    %p82 = scmp.eq.s32.totalorder %s11, 0
    %p83 = por %p81, %p82
    %p84 = scmp.ne.s32.totalorder %s73, %s76
    %p85 = scmp.eq.s32.totalorder %s16, 3
    %p86 = por %p84, %p85
    %p87 = scmp.ne.s32.totalorder %s76, %s77
    %p88 = scmp.eq.s32.totalorder %s16, 0
    %p89 = por %p87, %p88
    %p90 = scmp.ne.s32.totalorder %s76, %s77
    %p91 = scmp.eq.s32.totalorder %s17, 3
    %p92 = por %p90, %p91
    %p94 = scmp.ne.s32.totalorder %s77, %s93
    %p95 = scmp.eq.s32.totalorder %s17, 0
    %p96 = por %p94, %p95
    %s97 = smul.u32 %s18, 32
    %s98 = smul.u32 %s19, 16
    %s99 = sadd.s32 %s98, 16
    %p100 = scmp.lt.s32.totalorder %s99, 31
    %s101 = scalar_select %p100, %s99, 31
    %s102 = sadd.s32 %s97, %s101
    %s103 = smul.u32 %s30, 32
    %s104 = smul.u32 %s26, 16
    %s105 = sadd.s32 %s104, 16
    %p106 = scmp.lt.s32.totalorder %s105, 31
    %s107 = scalar_select %p106, %s105, 31
    %s108 = sadd.s32 %s103, %s107
    %s109 = ssub.s32 %s102, %s108
    %p110 = scmp.eq.s32.totalorder %s109, 0
    %s112 = sadd.s32 %s111, 1
    %s113 = scalar_select %p110, %s111, %s112
    %p116 = pneg %p110
    %p117 = scmp.eq.s32.totalorder %s11, 3
    %p118 = por %p116, %p117
    %p119 = scmp.ne.s32.totalorder %s111, %s114
    %p120 = scmp.eq.s32.totalorder %s11, 0
    %p121 = por %p119, %p120
    %p122 = scmp.ne.s32.totalorder %s111, %s114
    %p123 = scmp.eq.s32.totalorder %s16, 3
    %p124 = por %p122, %p123
    %p125 = scmp.ne.s32.totalorder %s114, %s115
    %p126 = scmp.eq.s32.totalorder %s16, 0
    %p127 = por %p125, %p126
    %p128 = scmp.ne.s32.totalorder %s114, %s115
    %p129 = scmp.eq.s32.totalorder %s17, 3
    %p130 = por %p128, %p129
    %p132 = scmp.ne.s32.totalorder %s115, %s131
    %p133 = scmp.eq.s32.totalorder %s17, 0
    %p134 = por %p132, %p133
    %s136 = sadd.s32 %s135, 1
    %p139 = scmp.eq.s32.totalorder %s11, 3
    %p140 = scmp.ne.s32.totalorder %s135, %s137
    %p141 = scmp.eq.s32.totalorder %s11, 0
    %p142 = por %p140, %p141
    %p143 = scmp.ne.s32.totalorder %s135, %s137
    %p144 = scmp.eq.s32.totalorder %s16, 3
    %p145 = por %p143, %p144
    %p146 = scmp.ne.s32.totalorder %s137, %s138
    %p147 = scmp.eq.s32.totalorder %s16, 0
    %p148 = por %p146, %p147
    %p149 = scmp.ne.s32.totalorder %s137, %s138
    %p150 = scmp.eq.s32.totalorder %s17, 3
    %p151 = por %p149, %p150
    %p153 = scmp.ne.s32.totalorder %s138, %s152
    %p154 = scmp.eq.s32.totalorder %s17, 0
    %p155 = por %p153, %p154
    %s157 = sadd.s32 %s156, 1
    %p160 = scmp.eq.s32.totalorder %s11, 3
    %p161 = scmp.ne.s32.totalorder %s156, %s158
    %p162 = scmp.eq.s32.totalorder %s11, 0
    %p163 = por %p161, %p162
    %p164 = scmp.ne.s32.totalorder %s156, %s158
    %p165 = scmp.eq.s32.totalorder %s16, 3
    %p166 = por %p164, %p165
    %p167 = scmp.ne.s32.totalorder %s158, %s159
    %p168 = scmp.eq.s32.totalorder %s16, 0
    %p169 = por %p167, %p168
    %p170 = scmp.ne.s32.totalorder %s158, %s159
    %p171 = scmp.eq.s32.totalorder %s17, 3
    %p172 = por %p170, %p171
    %p174 = scmp.ne.s32.totalorder %s159, %s173
    %p175 = scmp.eq.s32.totalorder %s17, 0
    %p176 = por %p174, %p175
    %s177 = ssub.s32 %s18, %s30
    %s178 = ssub.s32 %s19, %s26
    %s179 = sor.u32 %s177, %s178
    %p180 = scmp.eq.s32.totalorder %s179, 0
    %s182 = sadd.s32 %s181, 1
    %s183 = scalar_select %p180, %s181, %s182
    %p186 = pneg %p180
    %p187 = scmp.eq.s32.totalorder %s11, 3
    %p188 = por %p186, %p187
    %p189 = scmp.ne.s32.totalorder %s181, %s184
    %p190 = scmp.eq.s32.totalorder %s11, 0
    %p191 = por %p189, %p190
    %p192 = scmp.ne.s32.totalorder %s181, %s184
    %p193 = scmp.eq.s32.totalorder %s16, 3
    %p194 = por %p192, %p193
    %p195 = scmp.ne.s32.totalorder %s184, %s185
    %p196 = scmp.eq.s32.totalorder %s16, 0
    %p197 = por %p195, %p196
    %p198 = scmp.ne.s32.totalorder %s184, %s185
    %p199 = scmp.eq.s32.totalorder %s17, 3
    %p200 = por %p198, %p199
    %p202 = scmp.ne.s32.totalorder %s185, %s201
    %p203 = scmp.eq.s32.totalorder %s17, 0
    %p204 = por %p202, %p203
    %p205 = scmp.le.s32.totalorder 1, %s11
    %p206 = scmp.lt.s32.totalorder %s11, 5
    %p207 = pnand %p205, %p206
    %p208 = pneg %p207
    // Predicated region
    $region9: #{dwconv.1} parent=5 // pred_check
      _
    $region10: #{dwconv.1} parent=5 // pred_check_branch
      %210 = sbr.rel (%p207) target = $region12
    $region11: #{dwconv.1} parent=5 // pred_region
      %s211 = ssub.s32 %s11, 1
      // Predicated region
      $region13: #{dwconv.1} parent=11 // pred_check
        %p212 = pneg %p148
      $region14: #{dwconv.1} parent=11 // pred_check_branch
        %214 = sbr.rel (%p212) target = $region16
      $region15: #{dwconv.1} parent=11 // pred_region
        _
      $region16: #{dwconv.1} parent=11 // pred_fallthru
        _
      // Predicated region
      $region17: #{dwconv.1} parent=11 // pred_check
        %p215 = pneg %p169
      $region18: #{dwconv.1} parent=11 // pred_check_branch
        %217 = sbr.rel (%p215) target = $region20
      $region19: #{dwconv.1} parent=11 // pred_region
        _
      $region20: #{dwconv.1} parent=11 // pred_fallthru
        _
    $region12: #{dwconv.1} parent=5 // pred_fallthru
      _
    %p218 = scmp.lt.s32.totalorder %s11, 4
    // Predicated region
    $region21: #{dwconv.1} parent=5 // pred_check
      %p219 = pneg %p218
    $region22: #{dwconv.1} parent=5 // pred_check_branch
      %221 = sbr.rel (%p219) target = $region24
    $region23: #{dwconv.1} parent=5 // pred_region
      // Predicated region
      $region25: #{dwconv.1} parent=23 // pred_check
        %p222 = pneg %p45
      $region26: #{dwconv.1} parent=23 // pred_check_branch
        %224 = sbr.rel (%p222) target = $region28
      $region27: #{dwconv.1} parent=23 // pred_region
        %s225 = smul.u32 2, %s19
        %p226 = scmp.lt.s32.totalorder %s18, 1
        %s227 = scalar_select %p226, %s18, 1
        %p228 = scmp.lt.s32.totalorder %s225, 3
        %s229 = scalar_select %p228, %s225, 3
        %s230 = smul.addr %s229, 4
        %s231 = smul.addr %s227, 16
        %s232 = sadd.s32 %s230, %s231
        %s233 = smul.addr %s232, 8
        %s234 = scalar_lea.vmem %s0, %s233
        %s235 = smul.u32 2, %s19
      $region28: #{dwconv.1} parent=23 // pred_fallthru
        _
      // Predicated region
      $region29: #{dwconv.1} parent=23 // pred_check
        %p236 = pneg %p83
      $region30: #{dwconv.1} parent=23 // pred_check_branch
        %238 = sbr.rel (%p236) target = $region32
      $region31: #{dwconv.1} parent=23 // pred_region
        %s239 = smul.u32 %s18, 32
        %s240 = smul.u32 %s19, 16
        %s241 = ssub.s32 %s240, 1
        %p242 = scmp.gt.s32.totalorder %s241, 0
        %s243 = scalar_select %p242, %s241, 0
        %s244 = sadd.s32 %s239, %s243
        %p245 = scmp.lt.s32.totalorder %s244, 63
        %s246 = scalar_select %p245, %s244, 63
        %s247 = smul.addr %s246, 4
        %s248 = scalar_lea.vmem %s1, %s247
        %s249 = smul.u32 %s18, 32
        %s250 = smul.u32 %s19, 16
        %s251 = ssub.s32 %s250, 1
        %p252 = scmp.gt.s32.totalorder %s251, 0
        %s253 = scalar_select %p252, %s251, 0
        %s254 = sadd.s32 %s249, %s253
      $region32: #{dwconv.1} parent=23 // pred_fallthru
        _
      // Predicated region
      $region33: #{dwconv.1} parent=23 // pred_check
        %p255 = pneg %p121
      $region34: #{dwconv.1} parent=23 // pred_check_branch
        %257 = sbr.rel (%p255) target = $region36
      $region35: #{dwconv.1} parent=23 // pred_region
        %s258 = smul.u32 %s18, 32
        %s259 = smul.u32 %s19, 16
        %s260 = sadd.s32 %s259, 16
        %p261 = scmp.lt.s32.totalorder %s260, 31
        %s262 = scalar_select %p261, %s260, 31
        %s263 = sadd.s32 %s258, %s262
        %p264 = scmp.lt.s32.totalorder %s263, 63
        %s265 = scalar_select %p264, %s263, 63
        %s266 = smul.addr %s265, 4
        %s267 = scalar_lea.vmem %s2, %s266
        %s268 = smul.u32 %s18, 32
        %s269 = smul.u32 %s19, 16
        %s270 = sadd.s32 %s269, 16
        %p271 = scmp.lt.s32.totalorder %s270, 31
        %s272 = scalar_select %p271, %s270, 31
        %s273 = sadd.s32 %s268, %s272
      $region36: #{dwconv.1} parent=23 // pred_fallthru
        _
    $region24: #{dwconv.1} parent=5 // pred_fallthru
      _
    %p274 = scmp.le.s32.totalorder 1, %s11
    %p275 = scmp.lt.s32.totalorder %s11, 5
    %p276 = pnand %p274, %p275
    %p277 = pneg %p276
    // Predicated region
    $region37: #{dwconv.1} parent=5 // pred_check
      _
    $region38: #{dwconv.1} parent=5 // pred_check_branch
      %279 = sbr.rel (%p276) target = $region40
    $region39: #{dwconv.1} parent=5 // pred_region
      %s280 = ssub.s32 %s11, 1
      %s281 = smul.u32 2, %s21
      %p282 = scmp.lt.s32.totalorder %s20, 1
      %s283 = scalar_select %p282, %s20, 1
      %p284 = scmp.lt.s32.totalorder %s281, 3
      %s285 = scalar_select %p284, %s281, 3
      %s286 = smul.addr %s285, 4
      %s287 = smul.addr %s283, 16
      %s288 = sadd.s32 %s286, %s287
      %s289 = smul.addr %s288, 8
      %s290 = scalar_lea.vmem %s0, %s289
      %p291 = pneg %p51
      %p292 = pneg %p48
      %s293 = smul.u32 %s20, 32
      %s294 = smul.u32 %s21, 16
      %s295 = ssub.s32 %s294, 1
      %p296 = scmp.gt.s32.totalorder %s295, 0
      %s297 = scalar_select %p296, %s295, 0
      %s298 = sadd.s32 %s293, %s297
      %p299 = scmp.lt.s32.totalorder %s298, 63
      %s300 = scalar_select %p299, %s298, 63
      %s301 = smul.addr %s300, 4
      %s302 = scalar_lea.vmem %s1, %s301
      %p303 = pneg %p89
      %p304 = pneg %p86
      %s305 = smul.u32 %s20, 32
      %s306 = smul.u32 %s21, 16
      %s307 = sadd.s32 %s306, 16
      %p308 = scmp.lt.s32.totalorder %s307, 31
      %s309 = scalar_select %p308, %s307, 31
      %s310 = sadd.s32 %s305, %s309
      %p311 = scmp.lt.s32.totalorder %s310, 63
      %s312 = scalar_select %p311, %s310, 63
      %s313 = smul.addr %s312, 4
      %s314 = scalar_lea.vmem %s2, %s313
      %p315 = pneg %p127
      %p316 = pneg %p124
      %p317 = pneg %p148
      %p318 = pneg %p145
      %p319 = pneg %p169
      %p320 = pneg %p166
      %p321 = pneg %p197
      %p322 = pneg %p194
      %s323 = smul.u32 2, %s21
      %p324 = scmp.lt.s32.totalorder %s20, 1
      %s325 = scalar_select %p324, %s20, 1
      %p326 = scmp.lt.s32.totalorder %s323, 3
      %s327 = scalar_select %p326, %s323, 3
      %s328 = smul.addr %s327, 4
      %s329 = smul.addr %s325, 16
      %s330 = sadd.s32 %s328, %s329
      %s331 = smul.addr %s330, 8
      %s332 = scalar_lea.vmem %s5, %s331
      %s333 = smul.u32 2, %s21
      %p334 = scmp.lt.s32.totalorder %s20, 1
      %s335 = scalar_select %p334, %s20, 1
      %p336 = scmp.lt.s32.totalorder %s333, 3
      %s337 = scalar_select %p336, %s333, 3
      %s338 = smul.addr %s337, 4
      %s339 = smul.addr %s335, 16
      %s340 = sadd.s32 %s338, %s339
      %s341 = smul.addr %s340, 8
      %s342 = scalar_lea.vmem %s0, %s341
      %s343 = smul.u32 2, %s21
      %s344 = smul.u32 %s20, 32
      %s345 = smul.u32 %s21, 16
      %s346 = ssub.s32 %s345, 1
      %p347 = scmp.gt.s32.totalorder %s346, 0
      %s348 = scalar_select %p347, %s346, 0
      %s349 = sadd.s32 %s344, %s348
      %p350 = scmp.lt.s32.totalorder %s349, 63
      %s351 = scalar_select %p350, %s349, 63
      %s352 = smul.addr %s351, 4
      %s353 = scalar_lea.vmem %s1, %s352
      %s354 = smul.u32 %s20, 32
      %s355 = smul.u32 %s21, 16
      %s356 = ssub.s32 %s355, 1
      %p357 = scmp.gt.s32.totalorder %s356, 0
      %s358 = scalar_select %p357, %s356, 0
      %s359 = sadd.s32 %s354, %s358
      %s360 = smul.u32 %s20, 32
      %s361 = smul.u32 %s21, 16
      %s362 = sadd.s32 %s361, 16
      %p363 = scmp.lt.s32.totalorder %s362, 31
      %s364 = scalar_select %p363, %s362, 31
      %s365 = sadd.s32 %s360, %s364
      %p366 = scmp.lt.s32.totalorder %s365, 63
      %s367 = scalar_select %p366, %s365, 63
      %s368 = smul.addr %s367, 4
      %s369 = scalar_lea.vmem %s2, %s368
      %s370 = smul.u32 %s20, 32
      %s371 = smul.u32 %s21, 16
      %s372 = sadd.s32 %s371, 16
      %p373 = scmp.lt.s32.totalorder %s372, 31
      %s374 = scalar_select %p373, %s372, 31
      %s375 = sadd.s32 %s370, %s374
      %s376 = smul.u32 2, %s21
      %p377 = scmp.lt.s32.totalorder %s20, 1
      %s378 = scalar_select %p377, %s20, 1
      %p379 = scmp.lt.s32.totalorder %s376, 3
      %s380 = scalar_select %p379, %s376, 3
      %s381 = smul.addr %s380, 4
      %s382 = smul.addr %s378, 16
      %s383 = sadd.s32 %s381, %s382
      %s384 = smul.addr %s383, 8
      %s385 = scalar_lea.vmem %s5, %s384
      %s386 = smul.u32 2, %s21
      %vm387 = vcmask 1048320
      %388 = vst.msk [vmem:[#allocation2] sm:$0xff] %vm387, 0.0
      %389 = vst.msk [vmem:[#allocation2 + $0x30] sm:$0xff] %vm387, 0.0
      %vm390 = vcmask 1042176
      %391 = vst.msk [vmem:[#allocation2 + $0x60] sm:$0x3] %vm390, 0.0
      %vm392 = vcmask 261120
      %393 = vst.msk [vmem:[#allocation2 + $0x28] sm:$0xff] %vm392, 0.0
      %394 = vst.msk [vmem:[#allocation2 + $0x58] sm:$0xff] %vm392, 0.0
      %vm395 = vcmask 254976
      %396 = vst.msk [vmem:[#allocation2 + $0x88] sm:$0x3] %vm395, 0.0
      %p397 = scmp.gt.s32.totalorder %s21, 0
      // Predicated region
      $region41: #{dwconv.1} parent=39 // pred_check
        %p398 = pneg %p397
      $region42: #{dwconv.1} parent=39 // pred_check_branch
        %400 = sbr.rel (%p398) target = $region44
      $region43: #{dwconv.1} parent=39 // pred_region
        %v401 = vld [vmem:[%s353] sm:$0xf]
        %v402 = vlaneseq
        %vm403 = vcmp.ge.s32.totalorder %v402, 0
        %vm404 = vcmp.lt.s32.totalorder %v402, 512
        %vm405 = vmand %vm403, %vm404
        %s406 = scalar_lea.vmem [#allocation2], 8
        %407 = vst.msk [vmem:[%s406] ss:$8 sm:$0xf] %vm405, %v401
        %408 = vst.msk [vmem:[%s406] ss:$8 sm:$0x0] %vm405, %v401
      $region44: #{dwconv.1} parent=39 // pred_fallthru
        _
      %p409 = scmp.eq.s32.totalorder %s21, 0
      // Predicated region
      $region45: #{dwconv.1} parent=39 // pred_check
        %p410 = pneg %p409
      $region46: #{dwconv.1} parent=39 // pred_check_branch
        %412 = sbr.rel (%p410) target = $region48
      $region47: #{dwconv.1} parent=39 // pred_region
        %v413 = vlaneseq
        %vm414 = vcmp.ge.s32.totalorder %v413, 0
        %vm415 = vcmp.lt.s32.totalorder %v413, 512
        %vm416 = vmand %vm414, %vm415
        %s417 = scalar_lea.vmem [#allocation2], 8
        %418 = vst.msk [vmem:[%s417] ss:$8 sm:$0xf] %vm416, 0.0
        %419 = vst.msk [vmem:[%s417] ss:$8 sm:$0x0] %vm416, 0.0
      $region48: #{dwconv.1} parent=39 // pred_fallthru
        _
      %p420 = scmp.lt.s32.totalorder %s21, 1
      // Predicated region
      $region49: #{dwconv.1} parent=39 // pred_check
        %p421 = pneg %p420
      $region50: #{dwconv.1} parent=39 // pred_check_branch
        %423 = sbr.rel (%p421) target = $region52
      $region51: #{dwconv.1} parent=39 // pred_region
        %v424 = vld [vmem:[%s369] sm:$0xf]
        %v425 = vlaneseq
        %vm426 = vcmp.ge.s32.totalorder %v425, 0
        %vm427 = vcmp.lt.s32.totalorder %v425, 512
        %vm428 = vmand %vm426, %vm427
        %s429 = scalar_lea.vmem [#allocation2], 105
        %430 = vst.msk [vmem:[%s429] ss:$8 sm:$0xf] %vm428, %v424
        %431 = vst.msk [vmem:[%s429] ss:$8 sm:$0x0] %vm428, %v424
      $region52: #{dwconv.1} parent=39 // pred_fallthru
        _
      %p432 = scmp.eq.s32.totalorder %s21, 1
      // Predicated region
      $region53: #{dwconv.1} parent=39 // pred_check
        %p433 = pneg %p432
      $region54: #{dwconv.1} parent=39 // pred_check_branch
        %435 = sbr.rel (%p433) target = $region56
      $region55: #{dwconv.1} parent=39 // pred_region
        %v436 = vlaneseq
        %vm437 = vcmp.ge.s32.totalorder %v436, 0
        %vm438 = vcmp.lt.s32.totalorder %v436, 512
        %vm439 = vmand %vm437, %vm438
        %s440 = scalar_lea.vmem [#allocation2], 105
        %441 = vst.msk [vmem:[%s440] ss:$8 sm:$0xf] %vm439, 0.0
        %442 = vst.msk [vmem:[%s440] ss:$8 sm:$0x0] %vm439, 0.0
      $region56: #{dwconv.1} parent=39 // pred_fallthru
        _
      %v443 = vld [vmem:[%s342] sm:$0xff]
      %v444 = vld [vmem:[%s342 + $0x8] sm:$0xff]
      %v445 = vld [vmem:[%s342 + $0x10] sm:$0xff]
      %v446 = vld [vmem:[%s342 + $0x18] sm:$0xff]
      %v447 = vld [vmem:[%s342 + $0x20] sm:$0xff]
      %v448 = vld [vmem:[%s342 + $0x28] sm:$0xff]
      %v449 = vld [vmem:[%s342 + $0x30] sm:$0xff]
      %v450 = vld [vmem:[%s342 + $0x38] sm:$0xff]
      %vm459 = vcmask 1040384
      %v460 = vrot.slane %v443, 7
      %v461 = vrot.slane %v444, 7
      %v462 = vrot.slane %v445, 7
      %v463 = vrot.slane %v446, 7
      %v464 = vrot.slane %v447, 7
      %v465 = vsel %vm459, %v460, %v464
      %v466 = vrot.slane %v448, 7
      %v467 = vsel %vm459, %v461, %v466
      %v468 = vrot.slane %v449, 7
      %v469 = vsel %vm459, %v462, %v468
      %v470 = vrot.slane %v450, 7
      %v471 = vsel %vm459, %v463, %v470
      %484 = vst [vmem:[#allocation2 + $0x8] sm:$0xfe] %v460
      %485 = vst [vmem:[#allocation2 + $0x10] sm:$0xfe] %v461
      %486 = vst [vmem:[#allocation2 + $0x18] sm:$0xfe] %v462
      %487 = vst [vmem:[#allocation2 + $0x20] sm:$0xfe] %v463
      %488 = vst [vmem:[#allocation2 + $0x38] sm:$0xff] %v465
      %489 = vst [vmem:[#allocation2 + $0x40] sm:$0xff] %v467
      %490 = vst [vmem:[#allocation2 + $0x48] sm:$0xff] %v469
      %491 = vst [vmem:[#allocation2 + $0x50] sm:$0xff] %v471
      %492 = vst [vmem:[#allocation2 + $0x68] sm:$0x1] %v464
      %493 = vst [vmem:[#allocation2 + $0x70] sm:$0x1] %v466
      %494 = vst [vmem:[#allocation2 + $0x78] sm:$0x1] %v468
      %495 = vst [vmem:[#allocation2 + $0x80] sm:$0x1] %v470
      %v496 = vld [vmem:[%s4] sm:$0xf]
      %s497 = smul.u32 0, 6
      %s498 = smul.addr %s497, 8
      %s499 = scalar_lea.vmem [#allocation2], %s498
      %v500 = vld [vmem:[%s499] sm:$0xff]
      %v501 = vld [vmem:[%s499 + $0x8] sm:$0xff]
      %v502 = vld [vmem:[%s499 + $0x10] sm:$0xff]
      %v503 = vld [vmem:[%s499 + $0x18] sm:$0xff]
      %v504 = vld [vmem:[%s499 + $0x20] sm:$0xff]
      %v505 = vld [vmem:[%s499 + $0x28] sm:$0xff]
      %v506 = vld [vmem:[%s499 + $0x30] sm:$0x3]
      %v507 = vld [vmem:[%s499 + $0x38] sm:$0x3]
      %v508 = vld [vmem:[%s499 + $0x40] sm:$0x3]
      %v509 = vld [vmem:[%s499 + $0x48] sm:$0x3]
      %v510 = vld [vmem:[%s499 + $0x50] sm:$0x3]
      %v511 = vld [vmem:[%s499 + $0x58] sm:$0x3]
      %v513 = vperm.slane %v496, 0
      %v514 = vperm.slane %v496, 1
      %v515 = vperm.slane %v496, 2
      %v516 = vperm.slane %v496, 3
      %v521 = vld [vmem:[%s3] ss:$8 sm:$0xf]
      %v523 = vperm.slane %v521, 0
      %v524 = vperm.slane %v521, 1
      %v525 = vperm.slane %v521, 2
      %v526 = vperm.slane %v521, 3
      %527 = vrot.lane.b32.xlu0 %v523, 96
      %v528 = vpop.permute.xlu0 %527
      %529 = vrot.lane.b32.xlu0 %v524, 96
      %v530 = vpop.permute.xlu0 %529
      %531 = vrot.lane.b32.xlu0 %v525, 96
      %v532 = vpop.permute.xlu0 %531
      %533 = vrot.lane.b32.xlu0 %v526, 96
      %v534 = vpop.permute.xlu0 %533
      %vm535 = vcmask 785408
      %v536 = vsel %vm535, %v528, %v530
      %v537 = vsel %vm535, %v530, %v532
      %v538 = vsel %vm535, %v532, %v534
      %v544 = vmul.f32 %v500, %v528
      %v545 = vmul.f32 %v501, %v536
      %v546 = vmul.f32 %v502, %v537
      %v547 = vmul.f32 %v503, %v538
      %v548 = vmul.f32 %v504, %v534
      %554 = vrot.lane.b32.xlu0 %v544, 32
      %v555 = vpop.permute.xlu0 %554
      %556 = vrot.lane.b32.xlu0 %v545, 32
      %v557 = vpop.permute.xlu0 %556
      %558 = vrot.lane.b32.xlu0 %v546, 32
      %v559 = vpop.permute.xlu0 %558
      %560 = vrot.lane.b32.xlu0 %v547, 32
      %v561 = vpop.permute.xlu0 %560
      %562 = vrot.lane.b32.xlu0 %v548, 32
      %v563 = vpop.permute.xlu0 %562
      %v564 = vsel %vm392, %v555, %v557
      %v565 = vsel %vm392, %v557, %v559
      %v566 = vsel %vm392, %v559, %v561
      %v567 = vsel %vm392, %v561, %v563
      %v572 = vadd.f32 %v513, %v564
      %v573 = vadd.f32 %v514, %v565
      %v574 = vadd.f32 %v515, %v566
      %v575 = vadd.f32 %v516, %v567
      %s576 = scalar_lea.vmem %s3, 3
      %v577 = vld [vmem:[%s576] ss:$8 sm:$0xf]
      %v579 = vperm.slane %v577, 0
      %v580 = vperm.slane %v577, 1
      %v581 = vperm.slane %v577, 2
      %v582 = vperm.slane %v577, 3
      %583 = vrot.lane.b32.xlu0 %v579, 96
      %v584 = vpop.permute.xlu0 %583
      %585 = vrot.lane.b32.xlu0 %v580, 96
      %v586 = vpop.permute.xlu0 %585
      %587 = vrot.lane.b32.xlu0 %v581, 96
      %v588 = vpop.permute.xlu0 %587
      %589 = vrot.lane.b32.xlu0 %v582, 96
      %v590 = vpop.permute.xlu0 %589
      %v591 = vsel %vm535, %v584, %v586
      %v592 = vsel %vm535, %v586, %v588
      %v593 = vsel %vm535, %v588, %v590
      %v599 = vmul.f32 %v500, %v584
      %v600 = vmul.f32 %v501, %v591
      %v601 = vmul.f32 %v502, %v592
      %v602 = vmul.f32 %v503, %v593
      %v603 = vmul.f32 %v504, %v590
      %v604 = vmul.f32 %v506, %v584
      %v605 = vmul.f32 %v507, %v591
      %v606 = vmul.f32 %v508, %v592
      %v607 = vmul.f32 %v509, %v593
      %v608 = vmul.f32 %v510, %v590
      %vm619 = vcmask 1046528
      %v620 = vrot.slane %v599, 1
      %v621 = vrot.slane %v604, 1
      %v622 = vsel %vm619, %v620, %v621
      %v623 = vrot.slane %v600, 1
      %v624 = vrot.slane %v605, 1
      %v625 = vsel %vm619, %v623, %v624
      %v626 = vrot.slane %v601, 1
      %v627 = vrot.slane %v606, 1
      %v628 = vsel %vm619, %v626, %v627
      %v629 = vrot.slane %v602, 1
      %v630 = vrot.slane %v607, 1
      %v631 = vsel %vm619, %v629, %v630
      %v632 = vrot.slane %v603, 1
      %v633 = vrot.slane %v608, 1
      %v634 = vsel %vm619, %v632, %v633
      %635 = vrot.lane.b32.xlu0 %v622, 32
      %v636 = vpop.permute.xlu0 %635
      %637 = vrot.lane.b32.xlu0 %v625, 32
      %v638 = vpop.permute.xlu0 %637
      %639 = vrot.lane.b32.xlu0 %v628, 32
      %v640 = vpop.permute.xlu0 %639
      %641 = vrot.lane.b32.xlu0 %v631, 32
      %v642 = vpop.permute.xlu0 %641
      %643 = vrot.lane.b32.xlu0 %v634, 32
      %v644 = vpop.permute.xlu0 %643
      %v645 = vsel %vm392, %v636, %v638
      %v646 = vsel %vm392, %v638, %v640
      %v647 = vsel %vm392, %v640, %v642
      %v648 = vsel %vm392, %v642, %v644
      %v653 = vadd.f32 %v572, %v645
      %v654 = vadd.f32 %v573, %v646
      %v655 = vadd.f32 %v574, %v647
      %v656 = vadd.f32 %v575, %v648
      %s657 = scalar_lea.vmem %s3, 6
      %v658 = vld [vmem:[%s657] ss:$8 sm:$0xf]
      %v660 = vperm.slane %v658, 0
      %v661 = vperm.slane %v658, 1
      %v662 = vperm.slane %v658, 2
      %v663 = vperm.slane %v658, 3
      %664 = vrot.lane.b32.xlu0 %v660, 96
      %v665 = vpop.permute.xlu0 %664
      %666 = vrot.lane.b32.xlu0 %v661, 96
      %v667 = vpop.permute.xlu0 %666
      %668 = vrot.lane.b32.xlu0 %v662, 96
      %v669 = vpop.permute.xlu0 %668
      %670 = vrot.lane.b32.xlu0 %v663, 96
      %v671 = vpop.permute.xlu0 %670
      %v672 = vsel %vm535, %v665, %v667
      %v673 = vsel %vm535, %v667, %v669
      %v674 = vsel %vm535, %v669, %v671
      %v680 = vmul.f32 %v500, %v665
      %v681 = vmul.f32 %v501, %v672
      %v682 = vmul.f32 %v502, %v673
      %v683 = vmul.f32 %v503, %v674
      %v684 = vmul.f32 %v504, %v671
      %v685 = vmul.f32 %v506, %v665
      %v686 = vmul.f32 %v507, %v672
      %v687 = vmul.f32 %v508, %v673
      %v688 = vmul.f32 %v509, %v674
      %v689 = vmul.f32 %v510, %v671
      %vm700 = vcmask 1045504
      %v701 = vrot.slane %v680, 2
      %v702 = vrot.slane %v685, 2
      %v703 = vsel %vm700, %v701, %v702
      %v704 = vrot.slane %v681, 2
      %v705 = vrot.slane %v686, 2
      %v706 = vsel %vm700, %v704, %v705
      %v707 = vrot.slane %v682, 2
      %v708 = vrot.slane %v687, 2
      %v709 = vsel %vm700, %v707, %v708
      %v710 = vrot.slane %v683, 2
      %v711 = vrot.slane %v688, 2
      %v712 = vsel %vm700, %v710, %v711
      %v713 = vrot.slane %v684, 2
      %v714 = vrot.slane %v689, 2
      %v715 = vsel %vm700, %v713, %v714
      %716 = vrot.lane.b32.xlu0 %v703, 32
      %v717 = vpop.permute.xlu0 %716
      %718 = vrot.lane.b32.xlu0 %v706, 32
      %v719 = vpop.permute.xlu0 %718
      %720 = vrot.lane.b32.xlu0 %v709, 32
      %v721 = vpop.permute.xlu0 %720
      %722 = vrot.lane.b32.xlu0 %v712, 32
      %v723 = vpop.permute.xlu0 %722
      %724 = vrot.lane.b32.xlu0 %v715, 32
      %v725 = vpop.permute.xlu0 %724
      %v726 = vsel %vm392, %v717, %v719
      %v727 = vsel %vm392, %v719, %v721
      %v728 = vsel %vm392, %v721, %v723
      %v729 = vsel %vm392, %v723, %v725
      %v734 = vadd.f32 %v653, %v726
      %v735 = vadd.f32 %v654, %v727
      %v736 = vadd.f32 %v655, %v728
      %v737 = vadd.f32 %v656, %v729
      %s738 = scalar_lea.vmem %s3, 1
      %v739 = vld [vmem:[%s738] ss:$8 sm:$0xf]
      %v741 = vperm.slane %v739, 0
      %v742 = vperm.slane %v739, 1
      %v743 = vperm.slane %v739, 2
      %v744 = vperm.slane %v739, 3
      %v749 = vmul.f32 %v501, %v741
      %v750 = vmul.f32 %v502, %v742
      %v751 = vmul.f32 %v503, %v743
      %v752 = vmul.f32 %v504, %v744
      %v753 = vadd.f32 %v734, %v749
      %v754 = vadd.f32 %v735, %v750
      %v755 = vadd.f32 %v736, %v751
      %v756 = vadd.f32 %v737, %v752
      %s757 = scalar_lea.vmem %s3, 4
      %v758 = vld [vmem:[%s757] ss:$8 sm:$0xf]
      %v760 = vperm.slane %v758, 0
      %v761 = vperm.slane %v758, 1
      %v762 = vperm.slane %v758, 2
      %v763 = vperm.slane %v758, 3
      %v768 = vmul.f32 %v501, %v760
      %v769 = vmul.f32 %v502, %v761
      %v770 = vmul.f32 %v503, %v762
      %v771 = vmul.f32 %v504, %v763
      %v772 = vmul.f32 %v507, %v760
      %v773 = vmul.f32 %v508, %v761
      %v774 = vmul.f32 %v509, %v762
      %v775 = vmul.f32 %v510, %v763
      %v784 = vrot.slane %v768, 1
      %v785 = vrot.slane %v772, 1
      %v786 = vsel %vm619, %v784, %v785
      %v787 = vrot.slane %v769, 1
      %v788 = vrot.slane %v773, 1
      %v789 = vsel %vm619, %v787, %v788
      %v790 = vrot.slane %v770, 1
      %v791 = vrot.slane %v774, 1
      %v792 = vsel %vm619, %v790, %v791
      %v793 = vrot.slane %v771, 1
      %v794 = vrot.slane %v775, 1
      %v795 = vsel %vm619, %v793, %v794
      %v800 = vadd.f32 %v753, %v786
      %v801 = vadd.f32 %v754, %v789
      %v802 = vadd.f32 %v755, %v792
      %v803 = vadd.f32 %v756, %v795
      %s804 = scalar_lea.vmem %s3, 7
      %v805 = vld [vmem:[%s804] ss:$8 sm:$0xf]
      %v807 = vperm.slane %v805, 0
      %v808 = vperm.slane %v805, 1
      %v809 = vperm.slane %v805, 2
      %v810 = vperm.slane %v805, 3
      %v815 = vmul.f32 %v501, %v807
      %v816 = vmul.f32 %v502, %v808
      %v817 = vmul.f32 %v503, %v809
      %v818 = vmul.f32 %v504, %v810
      %v819 = vmul.f32 %v507, %v807
      %v820 = vmul.f32 %v508, %v808
      %v821 = vmul.f32 %v509, %v809
      %v822 = vmul.f32 %v510, %v810
      %v831 = vrot.slane %v815, 2
      %v832 = vrot.slane %v819, 2
      %v833 = vsel %vm700, %v831, %v832
      %v834 = vrot.slane %v816, 2
      %v835 = vrot.slane %v820, 2
      %v836 = vsel %vm700, %v834, %v835
      %v837 = vrot.slane %v817, 2
      %v838 = vrot.slane %v821, 2
      %v839 = vsel %vm700, %v837, %v838
      %v840 = vrot.slane %v818, 2
      %v841 = vrot.slane %v822, 2
      %v842 = vsel %vm700, %v840, %v841
      %v847 = vadd.f32 %v800, %v833
      %v848 = vadd.f32 %v801, %v836
      %v849 = vadd.f32 %v802, %v839
      %v850 = vadd.f32 %v803, %v842
      %s851 = scalar_lea.vmem %s3, 2
      %v852 = vld [vmem:[%s851] ss:$8 sm:$0xf]
      %v854 = vperm.slane %v852, 0
      %v855 = vperm.slane %v852, 1
      %v856 = vperm.slane %v852, 2
      %v857 = vperm.slane %v852, 3
      %858 = vrot.lane.b32.xlu0 %v854, 32
      %v859 = vpop.permute.xlu0 %858
      %860 = vrot.lane.b32.xlu0 %v855, 32
      %v861 = vpop.permute.xlu0 %860
      %862 = vrot.lane.b32.xlu0 %v856, 32
      %v863 = vpop.permute.xlu0 %862
      %864 = vrot.lane.b32.xlu0 %v857, 32
      %v865 = vpop.permute.xlu0 %864
      %v866 = vsel %vm392, %v859, %v861
      %v867 = vsel %vm392, %v861, %v863
      %v868 = vsel %vm392, %v863, %v865
      %v874 = vmul.f32 %v501, %v859
      %v875 = vmul.f32 %v502, %v866
      %v876 = vmul.f32 %v503, %v867
      %v877 = vmul.f32 %v504, %v868
      %v878 = vmul.f32 %v505, %v865
      %884 = vrot.lane.b32.xlu0 %v874, 96
      %v885 = vpop.permute.xlu0 %884
      %886 = vrot.lane.b32.xlu0 %v875, 96
      %v887 = vpop.permute.xlu0 %886
      %888 = vrot.lane.b32.xlu0 %v876, 96
      %v889 = vpop.permute.xlu0 %888
      %890 = vrot.lane.b32.xlu0 %v877, 96
      %v891 = vpop.permute.xlu0 %890
      %892 = vrot.lane.b32.xlu0 %v878, 96
      %v893 = vpop.permute.xlu0 %892
      %v894 = vsel %vm535, %v885, %v887
      %v895 = vsel %vm535, %v887, %v889
      %v896 = vsel %vm535, %v889, %v891
      %v897 = vsel %vm535, %v891, %v893
      %v902 = vadd.f32 %v847, %v894
      %v903 = vadd.f32 %v848, %v895
      %v904 = vadd.f32 %v849, %v896
      %v905 = vadd.f32 %v850, %v897
      %s906 = scalar_lea.vmem %s3, 5
      %v907 = vld [vmem:[%s906] ss:$8 sm:$0xf]
      %v909 = vperm.slane %v907, 0
      %v910 = vperm.slane %v907, 1
      %v911 = vperm.slane %v907, 2
      %v912 = vperm.slane %v907, 3
      %913 = vrot.lane.b32.xlu0 %v909, 32
      %v914 = vpop.permute.xlu0 %913
      %915 = vrot.lane.b32.xlu0 %v910, 32
      %v916 = vpop.permute.xlu0 %915
      %917 = vrot.lane.b32.xlu0 %v911, 32
      %v918 = vpop.permute.xlu0 %917
      %919 = vrot.lane.b32.xlu0 %v912, 32
      %v920 = vpop.permute.xlu0 %919
      %v921 = vsel %vm392, %v914, %v916
      %v922 = vsel %vm392, %v916, %v918
      %v923 = vsel %vm392, %v918, %v920
      %v929 = vmul.f32 %v501, %v914
      %v930 = vmul.f32 %v502, %v921
      %v931 = vmul.f32 %v503, %v922
      %v932 = vmul.f32 %v504, %v923
      %v933 = vmul.f32 %v505, %v920
      %v934 = vmul.f32 %v507, %v914
      %v935 = vmul.f32 %v508, %v921
      %v936 = vmul.f32 %v509, %v922
      %v937 = vmul.f32 %v510, %v923
      %v938 = vmul.f32 %v511, %v920
      %v949 = vrot.slane %v929, 1
      %v950 = vrot.slane %v934, 1
      %v951 = vsel %vm619, %v949, %v950
      %v952 = vrot.slane %v930, 1
      %v953 = vrot.slane %v935, 1
      %v954 = vsel %vm619, %v952, %v953
      %v955 = vrot.slane %v931, 1
      %v956 = vrot.slane %v936, 1
      %v957 = vsel %vm619, %v955, %v956
      %v958 = vrot.slane %v932, 1
      %v959 = vrot.slane %v937, 1
      %v960 = vsel %vm619, %v958, %v959
      %v961 = vrot.slane %v933, 1
      %v962 = vrot.slane %v938, 1
      %v963 = vsel %vm619, %v961, %v962
      %964 = vrot.lane.b32.xlu0 %v951, 96
      %v965 = vpop.permute.xlu0 %964
      %966 = vrot.lane.b32.xlu0 %v954, 96
      %v967 = vpop.permute.xlu0 %966
      %968 = vrot.lane.b32.xlu0 %v957, 96
      %v969 = vpop.permute.xlu0 %968
      %970 = vrot.lane.b32.xlu0 %v960, 96
      %v971 = vpop.permute.xlu0 %970
      %972 = vrot.lane.b32.xlu0 %v963, 96
      %v973 = vpop.permute.xlu0 %972
      %v974 = vsel %vm535, %v965, %v967
      %v975 = vsel %vm535, %v967, %v969
      %v976 = vsel %vm535, %v969, %v971
      %v977 = vsel %vm535, %v971, %v973
      %v982 = vadd.f32 %v902, %v974
      %v983 = vadd.f32 %v903, %v975
      %v984 = vadd.f32 %v904, %v976
      %v985 = vadd.f32 %v905, %v977
      %s986 = scalar_lea.vmem %s3, 32
      %v987 = vld [vmem:[%s986] ss:$8 sm:$0xf]
      %v989 = vperm.slane %v987, 0
      %v990 = vperm.slane %v987, 1
      %v991 = vperm.slane %v987, 2
      %v992 = vperm.slane %v987, 3
      %993 = vrot.lane.b32.xlu0 %v989, 32
      %v994 = vpop.permute.xlu0 %993
      %995 = vrot.lane.b32.xlu0 %v990, 32
      %v996 = vpop.permute.xlu0 %995
      %997 = vrot.lane.b32.xlu0 %v991, 32
      %v998 = vpop.permute.xlu0 %997
      %999 = vrot.lane.b32.xlu0 %v992, 32
      %v1000 = vpop.permute.xlu0 %999
      %v1001 = vsel %vm392, %v994, %v996
      %v1002 = vsel %vm392, %v996, %v998
      %v1003 = vsel %vm392, %v998, %v1000
      %v1009 = vmul.f32 %v501, %v994
      %v1010 = vmul.f32 %v502, %v1001
      %v1011 = vmul.f32 %v503, %v1002
      %v1012 = vmul.f32 %v504, %v1003
      %v1013 = vmul.f32 %v505, %v1000
      %v1014 = vmul.f32 %v507, %v994
      %v1015 = vmul.f32 %v508, %v1001
      %v1016 = vmul.f32 %v509, %v1002
      %v1017 = vmul.f32 %v510, %v1003
      %v1018 = vmul.f32 %v511, %v1000
      %v1029 = vrot.slane %v1009, 2
      %v1030 = vrot.slane %v1014, 2
      %v1031 = vsel %vm700, %v1029, %v1030
      %v1032 = vrot.slane %v1010, 2
      %v1033 = vrot.slane %v1015, 2
      %v1034 = vsel %vm700, %v1032, %v1033
      %v1035 = vrot.slane %v1011, 2
      %v1036 = vrot.slane %v1016, 2
      %v1037 = vsel %vm700, %v1035, %v1036
      %v1038 = vrot.slane %v1012, 2
      %v1039 = vrot.slane %v1017, 2
      %v1040 = vsel %vm700, %v1038, %v1039
      %v1041 = vrot.slane %v1013, 2
      %v1042 = vrot.slane %v1018, 2
      %v1043 = vsel %vm700, %v1041, %v1042
      %1044 = vrot.lane.b32.xlu0 %v1031, 96
      %v1045 = vpop.permute.xlu0 %1044
      %1046 = vrot.lane.b32.xlu0 %v1034, 96
      %v1047 = vpop.permute.xlu0 %1046
      %1048 = vrot.lane.b32.xlu0 %v1037, 96
      %v1049 = vpop.permute.xlu0 %1048
      %1050 = vrot.lane.b32.xlu0 %v1040, 96
      %v1051 = vpop.permute.xlu0 %1050
      %1052 = vrot.lane.b32.xlu0 %v1043, 96
      %v1053 = vpop.permute.xlu0 %1052
      %v1054 = vsel %vm535, %v1045, %v1047
      %v1055 = vsel %vm535, %v1047, %v1049
      %v1056 = vsel %vm535, %v1049, %v1051
      %v1057 = vsel %vm535, %v1051, %v1053
      %v1062 = vadd.f32 %v982, %v1054
      %v1063 = vadd.f32 %v983, %v1055
      %v1064 = vadd.f32 %v984, %v1056
      %v1065 = vadd.f32 %v985, %v1057
      %s1066 = smul.u32 0, 4
      %s1067 = smul.addr %s1066, 8
      %s1068 = scalar_lea.vmem %s385, %s1067
      %1069 = vst [vmem:[%s1068] sm:$0xff] %v1062
      %1070 = vst [vmem:[%s1068 + $0x8] sm:$0xff] %v1063
      %1071 = vst [vmem:[%s1068 + $0x10] sm:$0xff] %v1064
      %1072 = vst [vmem:[%s1068 + $0x18] sm:$0xff] %v1065
      %s1073 = smul.u32 1, 6
      %s1074 = smul.addr %s1073, 8
      %s1075 = scalar_lea.vmem [#allocation2], %s1074
      %v1076 = vld [vmem:[%s1075] sm:$0xff]
      %v1077 = vld [vmem:[%s1075 + $0x8] sm:$0xff]
      %v1078 = vld [vmem:[%s1075 + $0x10] sm:$0xff]
      %v1079 = vld [vmem:[%s1075 + $0x18] sm:$0xff]
      %v1080 = vld [vmem:[%s1075 + $0x20] sm:$0xff]
      %v1081 = vld [vmem:[%s1075 + $0x28] sm:$0xff]
      %v1082 = vld [vmem:[%s1075 + $0x30] sm:$0x3]
      %v1083 = vld [vmem:[%s1075 + $0x38] sm:$0x3]
      %v1084 = vld [vmem:[%s1075 + $0x40] sm:$0x3]
      %v1085 = vld [vmem:[%s1075 + $0x48] sm:$0x3]
      %v1086 = vld [vmem:[%s1075 + $0x50] sm:$0x3]
      %v1087 = vld [vmem:[%s1075 + $0x58] sm:$0x3]
      %v1088 = vld [vmem:[%s3] ss:$8 sm:$0xf]
      %v1090 = vperm.slane %v1088, 0
      %v1091 = vperm.slane %v1088, 1
      %v1092 = vperm.slane %v1088, 2
      %v1093 = vperm.slane %v1088, 3
      %1094 = vrot.lane.b32.xlu0 %v1090, 96
      %v1095 = vpop.permute.xlu0 %1094
      %1096 = vrot.lane.b32.xlu0 %v1091, 96
      %v1097 = vpop.permute.xlu0 %1096
      %1098 = vrot.lane.b32.xlu0 %v1092, 96
      %v1099 = vpop.permute.xlu0 %1098
      %1100 = vrot.lane.b32.xlu0 %v1093, 96
      %v1101 = vpop.permute.xlu0 %1100
      %v1102 = vsel %vm535, %v1095, %v1097
      %v1103 = vsel %vm535, %v1097, %v1099
      %v1104 = vsel %vm535, %v1099, %v1101
      %v1110 = vmul.f32 %v1076, %v1095
      %v1111 = vmul.f32 %v1077, %v1102
      %v1112 = vmul.f32 %v1078, %v1103
      %v1113 = vmul.f32 %v1079, %v1104
      %v1114 = vmul.f32 %v1080, %v1101
      %1120 = vrot.lane.b32.xlu0 %v1110, 32
      %v1121 = vpop.permute.xlu0 %1120
      %1122 = vrot.lane.b32.xlu0 %v1111, 32
      %v1123 = vpop.permute.xlu0 %1122
      %1124 = vrot.lane.b32.xlu0 %v1112, 32
      %v1125 = vpop.permute.xlu0 %1124
      %1126 = vrot.lane.b32.xlu0 %v1113, 32
      %v1127 = vpop.permute.xlu0 %1126
      %1128 = vrot.lane.b32.xlu0 %v1114, 32
      %v1129 = vpop.permute.xlu0 %1128
      %v1130 = vsel %vm392, %v1121, %v1123
      %v1131 = vsel %vm392, %v1123, %v1125
      %v1132 = vsel %vm392, %v1125, %v1127
      %v1133 = vsel %vm392, %v1127, %v1129
      %v1138 = vadd.f32 %v513, %v1130
      %v1139 = vadd.f32 %v514, %v1131
      %v1140 = vadd.f32 %v515, %v1132
      %v1141 = vadd.f32 %v516, %v1133
      %v1142 = vld [vmem:[%s576] ss:$8 sm:$0xf]
      %v1144 = vperm.slane %v1142, 0
      %v1145 = vperm.slane %v1142, 1
      %v1146 = vperm.slane %v1142, 2
      %v1147 = vperm.slane %v1142, 3
      %1148 = vrot.lane.b32.xlu0 %v1144, 96
      %v1149 = vpop.permute.xlu0 %1148
      %1150 = vrot.lane.b32.xlu0 %v1145, 96
      %v1151 = vpop.permute.xlu0 %1150
      %1152 = vrot.lane.b32.xlu0 %v1146, 96
      %v1153 = vpop.permute.xlu0 %1152
      %1154 = vrot.lane.b32.xlu0 %v1147, 96
      %v1155 = vpop.permute.xlu0 %1154
      %v1156 = vsel %vm535, %v1149, %v1151
      %v1157 = vsel %vm535, %v1151, %v1153
      %v1158 = vsel %vm535, %v1153, %v1155
      %v1164 = vmul.f32 %v1076, %v1149
      %v1165 = vmul.f32 %v1077, %v1156
      %v1166 = vmul.f32 %v1078, %v1157
      %v1167 = vmul.f32 %v1079, %v1158
      %v1168 = vmul.f32 %v1080, %v1155
      %v1169 = vmul.f32 %v1082, %v1149
      %v1170 = vmul.f32 %v1083, %v1156
      %v1171 = vmul.f32 %v1084, %v1157
      %v1172 = vmul.f32 %v1085, %v1158
      %v1173 = vmul.f32 %v1086, %v1155
      %v1184 = vrot.slane %v1164, 1
      %v1185 = vrot.slane %v1169, 1
      %v1186 = vsel %vm619, %v1184, %v1185
      %v1187 = vrot.slane %v1165, 1
      %v1188 = vrot.slane %v1170, 1
      %v1189 = vsel %vm619, %v1187, %v1188
      %v1190 = vrot.slane %v1166, 1
      %v1191 = vrot.slane %v1171, 1
      %v1192 = vsel %vm619, %v1190, %v1191
      %v1193 = vrot.slane %v1167, 1
      %v1194 = vrot.slane %v1172, 1
      %v1195 = vsel %vm619, %v1193, %v1194
      %v1196 = vrot.slane %v1168, 1
      %v1197 = vrot.slane %v1173, 1
      %v1198 = vsel %vm619, %v1196, %v1197
      %1199 = vrot.lane.b32.xlu0 %v1186, 32
      %v1200 = vpop.permute.xlu0 %1199
      %1201 = vrot.lane.b32.xlu0 %v1189, 32
      %v1202 = vpop.permute.xlu0 %1201
      %1203 = vrot.lane.b32.xlu0 %v1192, 32
      %v1204 = vpop.permute.xlu0 %1203
      %1205 = vrot.lane.b32.xlu0 %v1195, 32
      %v1206 = vpop.permute.xlu0 %1205
      %1207 = vrot.lane.b32.xlu0 %v1198, 32
      %v1208 = vpop.permute.xlu0 %1207
      %v1209 = vsel %vm392, %v1200, %v1202
      %v1210 = vsel %vm392, %v1202, %v1204
      %v1211 = vsel %vm392, %v1204, %v1206
      %v1212 = vsel %vm392, %v1206, %v1208
      %v1217 = vadd.f32 %v1138, %v1209
      %v1218 = vadd.f32 %v1139, %v1210
      %v1219 = vadd.f32 %v1140, %v1211
      %v1220 = vadd.f32 %v1141, %v1212
      %v1221 = vld [vmem:[%s657] ss:$8 sm:$0xf]
      %v1223 = vperm.slane %v1221, 0
      %v1224 = vperm.slane %v1221, 1
      %v1225 = vperm.slane %v1221, 2
      %v1226 = vperm.slane %v1221, 3
      %1227 = vrot.lane.b32.xlu0 %v1223, 96
      %v1228 = vpop.permute.xlu0 %1227
      %1229 = vrot.lane.b32.xlu0 %v1224, 96
      %v1230 = vpop.permute.xlu0 %1229
      %1231 = vrot.lane.b32.xlu0 %v1225, 96
      %v1232 = vpop.permute.xlu0 %1231
      %1233 = vrot.lane.b32.xlu0 %v1226, 96
      %v1234 = vpop.permute.xlu0 %1233
      %v1235 = vsel %vm535, %v1228, %v1230
      %v1236 = vsel %vm535, %v1230, %v1232
      %v1237 = vsel %vm535, %v1232, %v1234
      %v1243 = vmul.f32 %v1076, %v1228
      %v1244 = vmul.f32 %v1077, %v1235
      %v1245 = vmul.f32 %v1078, %v1236
      %v1246 = vmul.f32 %v1079, %v1237
      %v1247 = vmul.f32 %v1080, %v1234
      %v1248 = vmul.f32 %v1082, %v1228
      %v1249 = vmul.f32 %v1083, %v1235
      %v1250 = vmul.f32 %v1084, %v1236
      %v1251 = vmul.f32 %v1085, %v1237
      %v1252 = vmul.f32 %v1086, %v1234
      %v1263 = vrot.slane %v1243, 2
      %v1264 = vrot.slane %v1248, 2
      %v1265 = vsel %vm700, %v1263, %v1264
      %v1266 = vrot.slane %v1244, 2
      %v1267 = vrot.slane %v1249, 2
      %v1268 = vsel %vm700, %v1266, %v1267
      %v1269 = vrot.slane %v1245, 2
      %v1270 = vrot.slane %v1250, 2
      %v1271 = vsel %vm700, %v1269, %v1270
      %v1272 = vrot.slane %v1246, 2
      %v1273 = vrot.slane %v1251, 2
      %v1274 = vsel %vm700, %v1272, %v1273
      %v1275 = vrot.slane %v1247, 2
      %v1276 = vrot.slane %v1252, 2
      %v1277 = vsel %vm700, %v1275, %v1276
      %1278 = vrot.lane.b32.xlu0 %v1265, 32
      %v1279 = vpop.permute.xlu0 %1278
      %1280 = vrot.lane.b32.xlu0 %v1268, 32
      %v1281 = vpop.permute.xlu0 %1280
      %1282 = vrot.lane.b32.xlu0 %v1271, 32
      %v1283 = vpop.permute.xlu0 %1282
      %1284 = vrot.lane.b32.xlu0 %v1274, 32
      %v1285 = vpop.permute.xlu0 %1284
      %1286 = vrot.lane.b32.xlu0 %v1277, 32
      %v1287 = vpop.permute.xlu0 %1286
      %v1288 = vsel %vm392, %v1279, %v1281
      %v1289 = vsel %vm392, %v1281, %v1283
      %v1290 = vsel %vm392, %v1283, %v1285
      %v1291 = vsel %vm392, %v1285, %v1287
      %v1296 = vadd.f32 %v1217, %v1288
      %v1297 = vadd.f32 %v1218, %v1289
      %v1298 = vadd.f32 %v1219, %v1290
      %v1299 = vadd.f32 %v1220, %v1291
      %v1300 = vld [vmem:[%s738] ss:$8 sm:$0xf]
      %v1302 = vperm.slane %v1300, 0
      %v1303 = vperm.slane %v1300, 1
      %v1304 = vperm.slane %v1300, 2
      %v1305 = vperm.slane %v1300, 3
      %v1310 = vmul.f32 %v1077, %v1302
      %v1311 = vmul.f32 %v1078, %v1303
      %v1312 = vmul.f32 %v1079, %v1304
      %v1313 = vmul.f32 %v1080, %v1305
      %v1314 = vadd.f32 %v1296, %v1310
      %v1315 = vadd.f32 %v1297, %v1311
      %v1316 = vadd.f32 %v1298, %v1312
      %v1317 = vadd.f32 %v1299, %v1313
      %v1318 = vld [vmem:[%s757] ss:$8 sm:$0xf]
      %v1320 = vperm.slane %v1318, 0
      %v1321 = vperm.slane %v1318, 1
      %v1322 = vperm.slane %v1318, 2
      %v1323 = vperm.slane %v1318, 3
      %v1328 = vmul.f32 %v1077, %v1320
      %v1329 = vmul.f32 %v1078, %v1321
      %v1330 = vmul.f32 %v1079, %v1322
      %v1331 = vmul.f32 %v1080, %v1323
      %v1332 = vmul.f32 %v1083, %v1320
      %v1333 = vmul.f32 %v1084, %v1321
      %v1334 = vmul.f32 %v1085, %v1322
      %v1335 = vmul.f32 %v1086, %v1323
      %v1344 = vrot.slane %v1328, 1
      %v1345 = vrot.slane %v1332, 1
      %v1346 = vsel %vm619, %v1344, %v1345
      %v1347 = vrot.slane %v1329, 1
      %v1348 = vrot.slane %v1333, 1
      %v1349 = vsel %vm619, %v1347, %v1348
      %v1350 = vrot.slane %v1330, 1
      %v1351 = vrot.slane %v1334, 1
      %v1352 = vsel %vm619, %v1350, %v1351
      %v1353 = vrot.slane %v1331, 1
      %v1354 = vrot.slane %v1335, 1
      %v1355 = vsel %vm619, %v1353, %v1354
      %v1360 = vadd.f32 %v1314, %v1346
      %v1361 = vadd.f32 %v1315, %v1349
      %v1362 = vadd.f32 %v1316, %v1352
      %v1363 = vadd.f32 %v1317, %v1355
      %v1364 = vld [vmem:[%s804] ss:$8 sm:$0xf]
      %v1366 = vperm.slane %v1364, 0
      %v1367 = vperm.slane %v1364, 1
      %v1368 = vperm.slane %v1364, 2
      %v1369 = vperm.slane %v1364, 3
      %v1374 = vmul.f32 %v1077, %v1366
      %v1375 = vmul.f32 %v1078, %v1367
      %v1376 = vmul.f32 %v1079, %v1368
      %v1377 = vmul.f32 %v1080, %v1369
      %v1378 = vmul.f32 %v1083, %v1366
      %v1379 = vmul.f32 %v1084, %v1367
      %v1380 = vmul.f32 %v1085, %v1368
      %v1381 = vmul.f32 %v1086, %v1369
      %v1390 = vrot.slane %v1374, 2
      %v1391 = vrot.slane %v1378, 2
      %v1392 = vsel %vm700, %v1390, %v1391
      %v1393 = vrot.slane %v1375, 2
      %v1394 = vrot.slane %v1379, 2
      %v1395 = vsel %vm700, %v1393, %v1394
      %v1396 = vrot.slane %v1376, 2
      %v1397 = vrot.slane %v1380, 2
      %v1398 = vsel %vm700, %v1396, %v1397
      %v1399 = vrot.slane %v1377, 2
      %v1400 = vrot.slane %v1381, 2
      %v1401 = vsel %vm700, %v1399, %v1400
      %v1406 = vadd.f32 %v1360, %v1392
      %v1407 = vadd.f32 %v1361, %v1395
      %v1408 = vadd.f32 %v1362, %v1398
      %v1409 = vadd.f32 %v1363, %v1401
      %v1410 = vld [vmem:[%s851] ss:$8 sm:$0xf]
      %v1412 = vperm.slane %v1410, 0
      %v1413 = vperm.slane %v1410, 1
      %v1414 = vperm.slane %v1410, 2
      %v1415 = vperm.slane %v1410, 3
      %1416 = vrot.lane.b32.xlu0 %v1412, 32
      %v1417 = vpop.permute.xlu0 %1416
      %1418 = vrot.lane.b32.xlu0 %v1413, 32
      %v1419 = vpop.permute.xlu0 %1418
      %1420 = vrot.lane.b32.xlu0 %v1414, 32
      %v1421 = vpop.permute.xlu0 %1420
      %1422 = vrot.lane.b32.xlu0 %v1415, 32
      %v1423 = vpop.permute.xlu0 %1422
      %v1424 = vsel %vm392, %v1417, %v1419
      %v1425 = vsel %vm392, %v1419, %v1421
      %v1426 = vsel %vm392, %v1421, %v1423
      %v1432 = vmul.f32 %v1077, %v1417
      %v1433 = vmul.f32 %v1078, %v1424
      %v1434 = vmul.f32 %v1079, %v1425
      %v1435 = vmul.f32 %v1080, %v1426
      %v1436 = vmul.f32 %v1081, %v1423
      %1442 = vrot.lane.b32.xlu0 %v1432, 96
      %v1443 = vpop.permute.xlu0 %1442
      %1444 = vrot.lane.b32.xlu0 %v1433, 96
      %v1445 = vpop.permute.xlu0 %1444
      %1446 = vrot.lane.b32.xlu0 %v1434, 96
      %v1447 = vpop.permute.xlu0 %1446
      %1448 = vrot.lane.b32.xlu0 %v1435, 96
      %v1449 = vpop.permute.xlu0 %1448
      %1450 = vrot.lane.b32.xlu0 %v1436, 96
      %v1451 = vpop.permute.xlu0 %1450
      %v1452 = vsel %vm535, %v1443, %v1445
      %v1453 = vsel %vm535, %v1445, %v1447
      %v1454 = vsel %vm535, %v1447, %v1449
      %v1455 = vsel %vm535, %v1449, %v1451
      %v1460 = vadd.f32 %v1406, %v1452
      %v1461 = vadd.f32 %v1407, %v1453
      %v1462 = vadd.f32 %v1408, %v1454
      %v1463 = vadd.f32 %v1409, %v1455
      %v1464 = vld [vmem:[%s906] ss:$8 sm:$0xf]
      %v1466 = vperm.slane %v1464, 0
      %v1467 = vperm.slane %v1464, 1
      %v1468 = vperm.slane %v1464, 2
      %v1469 = vperm.slane %v1464, 3
      %1470 = vrot.lane.b32.xlu0 %v1466, 32
      %v1471 = vpop.permute.xlu0 %1470
      %1472 = vrot.lane.b32.xlu0 %v1467, 32
      %v1473 = vpop.permute.xlu0 %1472
      %1474 = vrot.lane.b32.xlu0 %v1468, 32
      %v1475 = vpop.permute.xlu0 %1474
      %1476 = vrot.lane.b32.xlu0 %v1469, 32
      %v1477 = vpop.permute.xlu0 %1476
      %v1478 = vsel %vm392, %v1471, %v1473
      %v1479 = vsel %vm392, %v1473, %v1475
      %v1480 = vsel %vm392, %v1475, %v1477
      %v1486 = vmul.f32 %v1077, %v1471
      %v1487 = vmul.f32 %v1078, %v1478
      %v1488 = vmul.f32 %v1079, %v1479
      %v1489 = vmul.f32 %v1080, %v1480
      %v1490 = vmul.f32 %v1081, %v1477
      %v1491 = vmul.f32 %v1083, %v1471
      %v1492 = vmul.f32 %v1084, %v1478
      %v1493 = vmul.f32 %v1085, %v1479
      %v1494 = vmul.f32 %v1086, %v1480
      %v1495 = vmul.f32 %v1087, %v1477
      %v1506 = vrot.slane %v1486, 1
      %v1507 = vrot.slane %v1491, 1
      %v1508 = vsel %vm619, %v1506, %v1507
      %v1509 = vrot.slane %v1487, 1
      %v1510 = vrot.slane %v1492, 1
      %v1511 = vsel %vm619, %v1509, %v1510
      %v1512 = vrot.slane %v1488, 1
      %v1513 = vrot.slane %v1493, 1
      %v1514 = vsel %vm619, %v1512, %v1513
      %v1515 = vrot.slane %v1489, 1
      %v1516 = vrot.slane %v1494, 1
      %v1517 = vsel %vm619, %v1515, %v1516
      %v1518 = vrot.slane %v1490, 1
      %v1519 = vrot.slane %v1495, 1
      %v1520 = vsel %vm619, %v1518, %v1519
      %1521 = vrot.lane.b32.xlu0 %v1508, 96
      %v1522 = vpop.permute.xlu0 %1521
      %1523 = vrot.lane.b32.xlu0 %v1511, 96
      %v1524 = vpop.permute.xlu0 %1523
      %1525 = vrot.lane.b32.xlu0 %v1514, 96
      %v1526 = vpop.permute.xlu0 %1525
      %1527 = vrot.lane.b32.xlu0 %v1517, 96
      %v1528 = vpop.permute.xlu0 %1527
      %1529 = vrot.lane.b32.xlu0 %v1520, 96
      %v1530 = vpop.permute.xlu0 %1529
      %v1531 = vsel %vm535, %v1522, %v1524
      %v1532 = vsel %vm535, %v1524, %v1526
      %v1533 = vsel %vm535, %v1526, %v1528
      %v1534 = vsel %vm535, %v1528, %v1530
      %v1539 = vadd.f32 %v1460, %v1531
      %v1540 = vadd.f32 %v1461, %v1532
      %v1541 = vadd.f32 %v1462, %v1533
      %v1542 = vadd.f32 %v1463, %v1534
      %v1543 = vld [vmem:[%s986] ss:$8 sm:$0xf]
      %v1545 = vperm.slane %v1543, 0
      %v1546 = vperm.slane %v1543, 1
      %v1547 = vperm.slane %v1543, 2
      %v1548 = vperm.slane %v1543, 3
      %1549 = vrot.lane.b32.xlu0 %v1545, 32
      %v1550 = vpop.permute.xlu0 %1549
      %1551 = vrot.lane.b32.xlu0 %v1546, 32
      %v1552 = vpop.permute.xlu0 %1551
      %1553 = vrot.lane.b32.xlu0 %v1547, 32
      %v1554 = vpop.permute.xlu0 %1553
      %1555 = vrot.lane.b32.xlu0 %v1548, 32
      %v1556 = vpop.permute.xlu0 %1555
      %v1557 = vsel %vm392, %v1550, %v1552
      %v1558 = vsel %vm392, %v1552, %v1554
      %v1559 = vsel %vm392, %v1554, %v1556
      %v1565 = vmul.f32 %v1077, %v1550
      %v1566 = vmul.f32 %v1078, %v1557
      %v1567 = vmul.f32 %v1079, %v1558
      %v1568 = vmul.f32 %v1080, %v1559
      %v1569 = vmul.f32 %v1081, %v1556
      %v1570 = vmul.f32 %v1083, %v1550
      %v1571 = vmul.f32 %v1084, %v1557
      %v1572 = vmul.f32 %v1085, %v1558
      %v1573 = vmul.f32 %v1086, %v1559
      %v1574 = vmul.f32 %v1087, %v1556
      %v1585 = vrot.slane %v1565, 2
      %v1586 = vrot.slane %v1570, 2
      %v1587 = vsel %vm700, %v1585, %v1586
      %v1588 = vrot.slane %v1566, 2
      %v1589 = vrot.slane %v1571, 2
      %v1590 = vsel %vm700, %v1588, %v1589
      %v1591 = vrot.slane %v1567, 2
      %v1592 = vrot.slane %v1572, 2
      %v1593 = vsel %vm700, %v1591, %v1592
      %v1594 = vrot.slane %v1568, 2
      %v1595 = vrot.slane %v1573, 2
      %v1596 = vsel %vm700, %v1594, %v1595
      %v1597 = vrot.slane %v1569, 2
      %v1598 = vrot.slane %v1574, 2
      %v1599 = vsel %vm700, %v1597, %v1598
      %1600 = vrot.lane.b32.xlu0 %v1587, 96
      %v1601 = vpop.permute.xlu0 %1600
      %1602 = vrot.lane.b32.xlu0 %v1590, 96
      %v1603 = vpop.permute.xlu0 %1602
      %1604 = vrot.lane.b32.xlu0 %v1593, 96
      %v1605 = vpop.permute.xlu0 %1604
      %1606 = vrot.lane.b32.xlu0 %v1596, 96
      %v1607 = vpop.permute.xlu0 %1606
      %1608 = vrot.lane.b32.xlu0 %v1599, 96
      %v1609 = vpop.permute.xlu0 %1608
      %v1610 = vsel %vm535, %v1601, %v1603
      %v1611 = vsel %vm535, %v1603, %v1605
      %v1612 = vsel %vm535, %v1605, %v1607
      %v1613 = vsel %vm535, %v1607, %v1609
      %v1618 = vadd.f32 %v1539, %v1610
      %v1619 = vadd.f32 %v1540, %v1611
      %v1620 = vadd.f32 %v1541, %v1612
      %v1621 = vadd.f32 %v1542, %v1613
      %s1622 = smul.u32 1, 4
      %s1623 = smul.addr %s1622, 8
      %s1624 = scalar_lea.vmem %s385, %s1623
      %1625 = vst [vmem:[%s1624] sm:$0xff] %v1618
      %1626 = vst [vmem:[%s1624 + $0x8] sm:$0xff] %v1619
      %1627 = vst [vmem:[%s1624 + $0x10] sm:$0xff] %v1620
      %1628 = vst [vmem:[%s1624 + $0x18] sm:$0xff] %v1621
      %s1629 = smul.u32 2, %s21
      %p1630 = scmp.lt.s32.totalorder %s20, 1
      %s1631 = scalar_select %p1630, %s20, 1
      %p1632 = scmp.lt.s32.totalorder %s1629, 3
      %s1633 = scalar_select %p1632, %s1629, 3
      %s1634 = smul.addr %s1633, 4
      %s1635 = smul.addr %s1631, 16
      %s1636 = sadd.s32 %s1634, %s1635
      %s1637 = smul.addr %s1636, 8
      %s1638 = scalar_lea.vmem %s5, %s1637
      // Predicated region
      $region57: #{dwconv.1} parent=39 // pred_check
        %p1639 = pneg %p194
      $region58: #{dwconv.1} parent=39 // pred_check_branch
        %1641 = sbr.rel (%p1639) target = $region60
      $region59: #{dwconv.1} parent=39 // pred_region
        %s1642 = smul.u32 2, %s21
      $region60: #{dwconv.1} parent=39 // pred_fallthru
        _
    $region40: #{dwconv.1} parent=5 // pred_fallthru
      _
    %p1643 = scmp.le.s32.totalorder 2, %s11
    // Predicated region
    $region61: #{dwconv.1} parent=5 // pred_check
      %p1644 = pneg %p1643
    $region62: #{dwconv.1} parent=5 // pred_check_branch
      %1646 = sbr.rel (%p1644) target = $region64
    $region63: #{dwconv.1} parent=5 // pred_region
      %s1647 = ssub.s32 %s11, 2
      // Predicated region
      $region65: #{dwconv.1} parent=63 // pred_check
        %p1648 = pneg %p200
      $region66: #{dwconv.1} parent=63 // pred_check_branch
        %1650 = sbr.rel (%p1648) target = $region68
      $region67: #{dwconv.1} parent=63 // pred_region
        %s1651 = smul.u32 2, %s23
        %p1652 = scmp.lt.s32.totalorder %s22, 1
        %s1653 = scalar_select %p1652, %s22, 1
        %p1654 = scmp.lt.s32.totalorder %s1651, 3
        %s1655 = scalar_select %p1654, %s1651, 3
        %s1656 = smul.addr %s1655, 4
        %s1657 = smul.addr %s1653, 16
        %s1658 = sadd.s32 %s1656, %s1657
        %s1659 = smul.addr %s1658, 8
        %s1660 = scalar_lea.vmem %s5, %s1659
      $region68: #{dwconv.1} parent=63 // pred_fallthru
        _
    $region64: #{dwconv.1} parent=5 // pred_fallthru
      _
  $region6: #{dwconv.1} parent=0 // loop_footer
    %s15 = sadd.s32 1, %s11
  $region7: #{dwconv.1} parent=0 // loop_footer_branch
    %10 = sbr.rel target = $region3
  $region8: #{dwconv.1} parent=0 // loop_exit
    _

</llo_original>
